<compile_context>
chip_gen: v7x
topology: tpu7x:2x2x1
jax: 0.10.0
libtpu: 0.0.40
codegen_flags: <defaults>
</compile_context>

<pallas_src>
import math

import jax
import jax.numpy as jnp
from jax import lax
from jax.experimental import pallas as pl
from jax.experimental.pallas import tpu as pltpu

_MASK_VALUE = -1e30  # large-negative additive mask (causal rows never fully masked)


def make_block_kernel(m, d, h, k, eps=1e-5):
    """Returns a kernel closed over the static config (m, d, h, k)."""
    assert h * k == d, "config requires d == h * k"
    scale = 1.0 / math.sqrt(k)
    gelu_c = math.sqrt(2.0 / math.pi)

    def kernel(x_ref, pi_ref, po_ref, w1_ref, w2_ref, vec_ref, o_ref,
               q_sc, k_sc, v_sc):
        x = x_ref[...].astype(jnp.float32)                               # [m, d]

        # unpack the packed LN / bias vectors (single (8, 4d) f32 slab)
        ln1_g = vec_ref[0:1, :d]
        ln1_b = vec_ref[1:2, :d]
        ln2_g = vec_ref[2:3, :d]
        ln2_b = vec_ref[3:4, :d]
        b2 = vec_ref[4:5, :d]
        b1 = vec_ref[5:6, :]

        def layer_norm(z, g, b):
            mu = jnp.mean(z, axis=-1, keepdims=True)
            var = jnp.mean((z - mu) ** 2, axis=-1, keepdims=True)
            return (z - mu) * lax.rsqrt(var + eps) * g + b

        # ---------------- MHA branch: LN -> QKV -> causal attn -> proj ------
        ln1 = layer_norm(x, ln1_g, ln1_b)                                # [m, d] f32
        qkv = jnp.dot(ln1.astype(jnp.bfloat16), pi_ref[...],
                      preferred_element_type=jnp.float32)                # [m, 3d] f32

        # stage per-head q/k/v into [h, m, k] bf16 scratch (head-batched attn);
        # the 1/sqrt(k) scale is folded into q here (m*k work, not m*m).
        for hh in range(h):                                              # h static & small
            base = hh * 3 * k
            q_sc[hh] = (qkv[:, base:base + k] * scale).astype(jnp.bfloat16)
            k_sc[hh] = qkv[:, base + k:base + 2 * k].astype(jnp.bfloat16)
            v_sc[hh] = qkv[:, base + 2 * k:base + 3 * k].astype(jnp.bfloat16)
        q_all = q_sc[...]                                                # [h, m, k]
        k_all = k_sc[...]
        v_all = v_sc[...]

        # additive causal mask: one `where` over [m, m], broadcast over heads
        row = lax.broadcasted_iota(jnp.int32, (m, m), 0)
        col = lax.broadcasted_iota(jnp.int32, (m, m), 1)
        mask_add = jnp.where(col <= row, 0.0, _MASK_VALUE).astype(jnp.float32)

        logits = jnp.einsum("hmk,hnk->hmn", q_all, k_all,
                            preferred_element_type=jnp.float32)          # [h, m, m]
        logits = logits + mask_add
        logits = logits - jnp.max(logits, axis=-1, keepdims=True)
        p = jnp.exp(logits)
        denom = jnp.sum(p, axis=-1, keepdims=True)
        p = p * pl.reciprocal(denom, approx=True)                        # softmax
        # attn_dropout: identity at inference

        ctx = jnp.einsum("hmn,hnk->hmk", p.astype(jnp.bfloat16), v_all,
                         preferred_element_type=jnp.float32)             # [h, m, k]
        ctx_bf = ctx.astype(jnp.bfloat16)

        # output projection: per-head rank-k updates accumulated in f32 (no concat)
        attn_out = jnp.zeros((m, d), jnp.float32)
        for hh in range(h):
            attn_out = attn_out + jnp.dot(ctx_bf[hh], po_ref[hh],
                                          preferred_element_type=jnp.float32)
        # resid_dropout: identity at inference
        x1 = x + attn_out                                                # residual 1

        # ---------------- MLP branch: LN -> Linear -> NewGELU -> Linear -----
        ln2 = layer_norm(x1, ln2_g, ln2_b)
        h1 = jnp.dot(ln2.astype(jnp.bfloat16), w1_ref[...],
                     preferred_element_type=jnp.float32) + b1            # [m, 4d]
        g = 0.5 * h1 * (1.0 + jnp.tanh(gelu_c * (h1 + 0.044715 * h1 ** 3)))
        h2 = jnp.dot(g.astype(jnp.bfloat16), w2_ref[...],
                     preferred_element_type=jnp.float32) + b2            # [m, d]
        # TODO(synk): Dropout layers are identity (inference); training-mode dropout
        # would need pltpu.prng_seed / pltpu.prng_random_bits.
        o_ref[...] = (x1 + h2).astype(o_ref.dtype)                       # residual 2

    return kernel


def block_forward(x, params, h, k):
    b, m, d = x.shape
    assert h * k == d
    kernel = make_block_kernel(m, d, h, k)

    # Weights shipped as bf16 (MXU-native; halves weight DMA + resident VMEM).
    pi_bf = params["P_i"].astype(jnp.bfloat16)                    # [d, 3d]
    po_bf = params["P_o"].reshape(h, k, d).astype(jnp.bfloat16)   # [h, k, d]
    w1_bf = params["W1"].astype(jnp.bfloat16)                     # [d, 4d]
    w2_bf = params["W2"].astype(jnp.bfloat16)                     # [4d, d]

    # Pack the six small vectors into a single (8, 4d) f32 slab (one DMA).
    vecs = jnp.zeros((8, 4 * d), jnp.float32)
    vecs = vecs.at[0, :d].set(params["ln1_g"][0])
    vecs = vecs.at[1, :d].set(params["ln1_b"][0])
    vecs = vecs.at[2, :d].set(params["ln2_g"][0])
    vecs = vecs.at[3, :d].set(params["ln2_b"][0])
    vecs = vecs.at[4, :d].set(params["b2"][0])
    vecs = vecs.at[5, :].set(params["b1"][0])

    def fixed(shape):
        # whole-array block, same block index for every grid step (fetched once)
        return pl.BlockSpec(shape, lambda i, n=len(shape): (0,) * n)

    grid_spec = pltpu.PrefetchScalarGridSpec(
        num_scalar_prefetch=0,
        grid=(b,),
        in_specs=[
            pl.BlockSpec((None, m, d), lambda i: (i, 0, 0)),      # x (batch squeezed)
            fixed((d, 3 * d)),                                    # P_i   (bf16)
            fixed((h, k, d)),                                     # P_o per-head (bf16)
            fixed((d, 4 * d)),                                    # W1    (bf16)
            fixed((4 * d, d)),                                    # W2    (bf16)
            fixed((8, 4 * d)),                                    # packed vectors (f32)
        ],
        out_specs=pl.BlockSpec((None, m, d), lambda i: (i, 0, 0)),
        scratch_shapes=[
            pltpu.VMEM((h, m, k), jnp.bfloat16),                  # q staging
            pltpu.VMEM((h, m, k), jnp.bfloat16),                  # k staging
            pltpu.VMEM((h, m, k), jnp.bfloat16),                  # v staging
        ],
    )

    # Explicit scoped-VMEM limit: rough per-step footprint (weights + pipelined
    # activations + attention/MLP intermediates), clamped to a range that is
    # safe on v5e/v6e (128 MiB physical) and v7x (64 MiB physical).
    bf, f4 = 2, 4
    weight_bytes = (d * 3 * d + d * d + d * 4 * d + 4 * d * d) * bf + 8 * 4 * d * f4
    act_bytes = (6 * m * d + m * 3 * d + 2 * m * 4 * d
                 + 2 * h * m * m + 4 * h * m * k) * f4
    est = 2 * weight_bytes + 2 * (2 * m * d * f4) + act_bytes
    vmem_limit = int(min(max(2 * est, 32 * (1 << 20)), 100 * (1 << 20)))

    return pl.pallas_call(
        kernel,
        out_shape=jax.ShapeDtypeStruct((b, m, d), x.dtype),
        grid_spec=grid_spec,
        compiler_params=pltpu.CompilerParams(
            dimension_semantics=("parallel",),
            vmem_limit_bytes=vmem_limit),
    )(x, pi_bf, po_bf, w1_bf, w2_bf, vecs)


def block_reference(x, params, h, k, eps=1e-5):
    """Pure-JAX f32 reference of the PyTorch Block forward (dropout = identity)."""
    b, m, d = x.shape

    def ln(z, g, b_):
        mu = jnp.mean(z, axis=-1, keepdims=True)
        var = jnp.mean((z - mu) ** 2, axis=-1, keepdims=True)
        return (z - mu) / jnp.sqrt(var + eps) * g + b_

    # MHA
    t = ln(x, params["ln1_g"][0], params["ln1_b"][0]) @ params["P_i"]     # [b,m,3d]
    t = t.reshape(b, m, h, 3 * k).transpose(0, 2, 1, 3)                   # [b,h,m,3k]
    Q, K, V = t[..., :k], t[..., k:2 * k], t[..., 2 * k:]
    logits = jnp.einsum("bhmk,bhnk->bhmn", Q, K) / math.sqrt(k)
    mask = jnp.tril(jnp.ones((m, m), bool))
    logits = jnp.where(mask, logits, -jnp.inf)
    w = jax.nn.softmax(logits, axis=-1)
    o = (w @ V).transpose(0, 2, 1, 3).reshape(b, m, h * k)
    x = x + o @ params["P_o"]
    # MLP
    z = ln(x, params["ln2_g"][0], params["ln2_b"][0])
    h1 = z @ params["W1"] + params["b1"][0]
    g = 0.5 * h1 * (1.0 + jnp.tanh(math.sqrt(2.0 / math.pi)
                                   * (h1 + 0.044715 * h1 ** 3)))
    return x + (g @ params["W2"] + params["b2"][0])


if __name__ == "__main__":
    # small config: batch=2, seq m=8, d=32, heads h=4, head dim k=8
    B, M, D, H, K = 2, 8, 32, 4, 8

    key = jax.random.PRNGKey(0)
    ks = jax.random.split(key, 8)

    def uni(k_, shape, fan_in):
        bound = math.sqrt(6.0 / fan_in)   # kaiming-uniform style, deterministic
        return jax.random.uniform(k_, shape, jnp.float32, -bound, bound)

    params = {
        "P_i": uni(ks[0], (D, 3 * D), D),
        "P_o": uni(ks[1], (D, D), D),
        "ln1_g": jnp.ones((1, D), jnp.float32),
        "ln1_b": jnp.zeros((1, D), jnp.float32),
        "ln2_g": jnp.ones((1, D), jnp.float32),
        "ln2_b": jnp.zeros((1, D), jnp.float32),
        # Linear(d, 4d) weights stored pre-transposed as [in, out]
        "W1": uni(ks[2], (D, 4 * D), D),
        "b1": uni(ks[3], (1, 4 * D), D),
        "W2": uni(ks[4], (4 * D, D), 4 * D),
        "b2": uni(ks[5], (1, D), 4 * D),
    }

    x = jax.random.normal(ks[6], (B, M, D), jnp.float32)

    out = jax.block_until_ready(block_forward(x, params, H, K))

    # Reference uses the same bf16-rounded weights the kernel consumes, so the
    # check isolates kernel correctness from the intentional bf16 weight cast.
    params_ref = dict(params)
    for name in ("P_i", "P_o", "W1", "W2"):
        params_ref[name] = params[name].astype(jnp.bfloat16).astype(jnp.float32)
    ref = jax.block_until_ready(block_reference(x, params_ref, H, K))

    assert out.shape == (B, M, D)
    max_err = float(jnp.max(jnp.abs(out - ref)))
    assert jnp.allclose(out, ref, atol=5e-2, rtol=5e-2), (
        f"mismatch vs reference (max abs err {max_err:.3e})")
    print("KERNEL_OK")
</pallas_src>

<mosaic_0001>
module attributes {stable_mosaic.version = 11 : i64} {
  func.func @kernel(%arg0: i32, %arg1: memref<1x8x32xf32, #tpu.memory_space<vmem>>, %arg2: memref<32x96xbf16, #tpu.memory_space<vmem>>, %arg3: memref<4x8x32xbf16, #tpu.memory_space<vmem>>, %arg4: memref<32x128xbf16, #tpu.memory_space<vmem>>, %arg5: memref<128x32xbf16, #tpu.memory_space<vmem>>, %arg6: memref<8x128xf32, #tpu.memory_space<vmem>>, %arg7: memref<1x8x32xf32, #tpu.memory_space<vmem>>, %arg8: memref<4x8x8xbf16, #tpu.memory_space<vmem>>, %arg9: memref<4x8x8xbf16, #tpu.memory_space<vmem>>, %arg10: memref<4x8x8xbf16, #tpu.memory_space<vmem>>) attributes {dimension_semantics = [#tpu.dimension_semantics<parallel>], iteration_bounds = array<i64: 2>, scalar_prefetch = 0 : i64, scratch_operands = 3 : i64, tpu.core_type = #tpu.core_type<tc>, window_params = [{transform_indices = @transform_0, window_bounds = array<i64: 1, 8, 32>}, {pipeline_mode = #tpu.pipeline_mode<synchronous>, transform_indices = @transform_1, window_bounds = array<i64: 32, 96>}, {pipeline_mode = #tpu.pipeline_mode<synchronous>, transform_indices = @transform_2, window_bounds = array<i64: 4, 8, 32>}, {pipeline_mode = #tpu.pipeline_mode<synchronous>, transform_indices = @transform_3, window_bounds = array<i64: 32, 128>}, {pipeline_mode = #tpu.pipeline_mode<synchronous>, transform_indices = @transform_4, window_bounds = array<i64: 128, 32>}, {pipeline_mode = #tpu.pipeline_mode<synchronous>, transform_indices = @transform_5, window_bounds = array<i64: 8, 128>}, {transform_indices = @transform_6, window_bounds = array<i64: 1, 8, 32>}]} {
    %c0 = arith.constant 0 : index
    %c0_0 = arith.constant 0 : index
    %c0_1 = arith.constant 0 : index
    %0 = vector.load %arg1[%c0, %c0_0, %c0_1] : memref<1x8x32xf32, #tpu.memory_space<vmem>>, vector<1x8x32xf32>
    %1 = vector.shape_cast %0 : vector<1x8x32xf32> to vector<8x32xf32>
    %c0_2 = arith.constant 0 : index
    %c0_3 = arith.constant 0 : index
    %2 = vector.load %arg6[%c0_2, %c0_3] : memref<8x128xf32, #tpu.memory_space<vmem>>, vector<1x32xf32>
    %c1 = arith.constant 1 : index
    %c0_4 = arith.constant 0 : index
    %3 = vector.load %arg6[%c1, %c0_4] : memref<8x128xf32, #tpu.memory_space<vmem>>, vector<1x32xf32>
    %c2 = arith.constant 2 : index
    %c0_5 = arith.constant 0 : index
    %4 = vector.load %arg6[%c2, %c0_5] : memref<8x128xf32, #tpu.memory_space<vmem>>, vector<1x32xf32>
    %c3 = arith.constant 3 : index
    %c0_6 = arith.constant 0 : index
    %5 = vector.load %arg6[%c3, %c0_6] : memref<8x128xf32, #tpu.memory_space<vmem>>, vector<1x32xf32>
    %c4 = arith.constant 4 : index
    %c0_7 = arith.constant 0 : index
    %6 = vector.load %arg6[%c4, %c0_7] : memref<8x128xf32, #tpu.memory_space<vmem>>, vector<1x32xf32>
    %c5 = arith.constant 5 : index
    %c0_8 = arith.constant 0 : index
    %7 = vector.load %arg6[%c5, %c0_8] : memref<8x128xf32, #tpu.memory_space<vmem>>, vector<1x128xf32>
    %cst = arith.constant dense<0.000000e+00> : vector<8xf32>
    %8 = vector.multi_reduction <add>, %1, %cst [1] : vector<8x32xf32> to vector<8xf32>
    %9 = vector.shape_cast %8 : vector<8xf32> to vector<8x1xf32>
    %cst_9 = arith.constant 3.200000e+01 : f32
    %10 = vector.broadcast %cst_9 : f32 to vector<8x1xf32>
    %11 = arith.divf %9, %10 : vector<8x1xf32>
    %12 = vector.broadcast %11 : vector<8x1xf32> to vector<8x32xf32>
    %13 = arith.subf %1, %12 : vector<8x32xf32>
    %14 = arith.mulf %13, %13 : vector<8x32xf32>
    %cst_10 = arith.constant dense<0.000000e+00> : vector<8xf32>
    %15 = vector.multi_reduction <add>, %14, %cst_10 [1] : vector<8x32xf32> to vector<8xf32>
    %16 = vector.shape_cast %15 : vector<8xf32> to vector<8x1xf32>
    %cst_11 = arith.constant 3.200000e+01 : f32
    %17 = vector.broadcast %cst_11 : f32 to vector<8x1xf32>
    %18 = arith.divf %16, %17 : vector<8x1xf32>
    %19 = vector.broadcast %11 : vector<8x1xf32> to vector<8x32xf32>
    %20 = arith.subf %1, %19 : vector<8x32xf32>
    %cst_12 = arith.constant 9.99999974E-6 : f32
    %21 = vector.broadcast %cst_12 : f32 to vector<8x1xf32>
    %22 = arith.addf %18, %21 : vector<8x1xf32>
    %23 = math.rsqrt %22 : vector<8x1xf32>
    %24 = vector.broadcast %23 : vector<8x1xf32> to vector<8x32xf32>
    %25 = arith.mulf %20, %24 : vector<8x32xf32>
    %26 = vector.broadcast %2 : vector<1x32xf32> to vector<8x32xf32>
    %27 = arith.mulf %25, %26 : vector<8x32xf32>
    %28 = vector.broadcast %3 : vector<1x32xf32> to vector<8x32xf32>
    %29 = arith.addf %27, %28 : vector<8x32xf32>
    %30 = arith.truncf %29 : vector<8x32xf32> to vector<8x32xbf16>
    %c0_13 = arith.constant 0 : index
    %c0_14 = arith.constant 0 : index
    %31 = vector.load %arg2[%c0_13, %c0_14] : memref<32x96xbf16, #tpu.memory_space<vmem>>, vector<32x96xbf16>
    %cst_15 = arith.constant dense<0.000000e+00> : vector<8x96xf32>
    %32 = tpu.matmul %30, %31, %cst_15 {dimension_numbers = #tpu.dot_dimension_numbers<[1], [0], [0], [1], [0, 0, 1, 1], [], []>} : vector<8x32xbf16>, vector<32x96xbf16>, vector<8x96xf32> -> vector<8x96xf32>
    %33 = vector.extract_strided_slice %32 {offsets = [0, 0], sizes = [8, 8], strides = [1, 1]} : vector<8x96xf32> to vector<8x8xf32>
    %cst_16 = arith.constant 0.353553385 : f32
    %34 = vector.broadcast %cst_16 : f32 to vector<8x8xf32>
    %35 = arith.mulf %33, %34 : vector<8x8xf32>
    %36 = arith.truncf %35 : vector<8x8xf32> to vector<8x8xbf16>
    %c0_17 = arith.constant 0 : index
    %c0_18 = arith.constant 0 : index
    %c0_19 = arith.constant 0 : index
    %37 = vector.load %arg8[%c0_17, %c0_18, %c0_19] : memref<4x8x8xbf16, #tpu.memory_space<vmem>>, vector<1x8x8xbf16>
    %38 = vector.shape_cast %37 : vector<1x8x8xbf16> to vector<8x8xbf16>
    %39 = vector.shape_cast %36 : vector<8x8xbf16> to vector<1x8x8xbf16>
    tpu.vector_store %arg8[%c0_17, %c0_18, %c0_19], %39 {strides = array<i32>} : memref<4x8x8xbf16, #tpu.memory_space<vmem>>, vector<1x8x8xbf16>,
    %40 = vector.extract_strided_slice %32 {offsets = [0, 8], sizes = [8, 8], strides = [1, 1]} : vector<8x96xf32> to vector<8x8xf32>
    %41 = arith.truncf %40 : vector<8x8xf32> to vector<8x8xbf16>
    %c0_20 = arith.constant 0 : index
    %c0_21 = arith.constant 0 : index
    %c0_22 = arith.constant 0 : index
    %42 = vector.load %arg9[%c0_20, %c0_21, %c0_22] : memref<4x8x8xbf16, #tpu.memory_space<vmem>>, vector<1x8x8xbf16>
    %43 = vector.shape_cast %42 : vector<1x8x8xbf16> to vector<8x8xbf16>
    %44 = vector.shape_cast %41 : vector<8x8xbf16> to vector<1x8x8xbf16>
    tpu.vector_store %arg9[%c0_20, %c0_21, %c0_22], %44 {strides = array<i32>} : memref<4x8x8xbf16, #tpu.memory_space<vmem>>, vector<1x8x8xbf16>,
    %45 = vector.extract_strided_slice %32 {offsets = [0, 16], sizes = [8, 8], strides = [1, 1]} : vector<8x96xf32> to vector<8x8xf32>
    %46 = arith.truncf %45 : vector<8x8xf32> to vector<8x8xbf16>
    %c0_23 = arith.constant 0 : index
    %c0_24 = arith.constant 0 : index
    %c0_25 = arith.constant 0 : index
    %47 = vector.load %arg10[%c0_23, %c0_24, %c0_25] : memref<4x8x8xbf16, #tpu.memory_space<vmem>>, vector<1x8x8xbf16>
    %48 = vector.shape_cast %47 : vector<1x8x8xbf16> to vector<8x8xbf16>
    %49 = vector.shape_cast %46 : vector<8x8xbf16> to vector<1x8x8xbf16>
    tpu.vector_store %arg10[%c0_23, %c0_24, %c0_25], %49 {strides = array<i32>} : memref<4x8x8xbf16, #tpu.memory_space<vmem>>, vector<1x8x8xbf16>,
    %50 = vector.extract_strided_slice %32 {offsets = [0, 24], sizes = [8, 8], strides = [1, 1]} : vector<8x96xf32> to vector<8x8xf32>
    %cst_26 = arith.constant 0.353553385 : f32
    %51 = vector.broadcast %cst_26 : f32 to vector<8x8xf32>
    %52 = arith.mulf %50, %51 : vector<8x8xf32>
    %53 = arith.truncf %52 : vector<8x8xf32> to vector<8x8xbf16>
    %c1_27 = arith.constant 1 : index
    %c0_28 = arith.constant 0 : index
    %c0_29 = arith.constant 0 : index
    %54 = vector.load %arg8[%c1_27, %c0_28, %c0_29] : memref<4x8x8xbf16, #tpu.memory_space<vmem>>, vector<1x8x8xbf16>
    %55 = vector.shape_cast %54 : vector<1x8x8xbf16> to vector<8x8xbf16>
    %56 = vector.shape_cast %53 : vector<8x8xbf16> to vector<1x8x8xbf16>
    tpu.vector_store %arg8[%c1_27, %c0_28, %c0_29], %56 {strides = array<i32>} : memref<4x8x8xbf16, #tpu.memory_space<vmem>>, vector<1x8x8xbf16>,
    %57 = vector.extract_strided_slice %32 {offsets = [0, 32], sizes = [8, 8], strides = [1, 1]} : vector<8x96xf32> to vector<8x8xf32>
    %58 = arith.truncf %57 : vector<8x8xf32> to vector<8x8xbf16>
    %c1_30 = arith.constant 1 : index
    %c0_31 = arith.constant 0 : index
    %c0_32 = arith.constant 0 : index
    %59 = vector.load %arg9[%c1_30, %c0_31, %c0_32] : memref<4x8x8xbf16, #tpu.memory_space<vmem>>, vector<1x8x8xbf16>
    %60 = vector.shape_cast %59 : vector<1x8x8xbf16> to vector<8x8xbf16>
    %61 = vector.shape_cast %58 : vector<8x8xbf16> to vector<1x8x8xbf16>
    tpu.vector_store %arg9[%c1_30, %c0_31, %c0_32], %61 {strides = array<i32>} : memref<4x8x8xbf16, #tpu.memory_space<vmem>>, vector<1x8x8xbf16>,
    %62 = vector.extract_strided_slice %32 {offsets = [0, 40], sizes = [8, 8], strides = [1, 1]} : vector<8x96xf32> to vector<8x8xf32>
    %63 = arith.truncf %62 : vector<8x8xf32> to vector<8x8xbf16>
    %c1_33 = arith.constant 1 : index
    %c0_34 = arith.constant 0 : index
    %c0_35 = arith.constant 0 : index
    %64 = vector.load %arg10[%c1_33, %c0_34, %c0_35] : memref<4x8x8xbf16, #tpu.memory_space<vmem>>, vector<1x8x8xbf16>
    %65 = vector.shape_cast %64 : vector<1x8x8xbf16> to vector<8x8xbf16>
    %66 = vector.shape_cast %63 : vector<8x8xbf16> to vector<1x8x8xbf16>
    tpu.vector_store %arg10[%c1_33, %c0_34, %c0_35], %66 {strides = array<i32>} : memref<4x8x8xbf16, #tpu.memory_space<vmem>>, vector<1x8x8xbf16>,
    %67 = vector.extract_strided_slice %32 {offsets = [0, 48], sizes = [8, 8], strides = [1, 1]} : vector<8x96xf32> to vector<8x8xf32>
    %cst_36 = arith.constant 0.353553385 : f32
    %68 = vector.broadcast %cst_36 : f32 to vector<8x8xf32>
    %69 = arith.mulf %67, %68 : vector<8x8xf32>
    %70 = arith.truncf %69 : vector<8x8xf32> to vector<8x8xbf16>
    %c2_37 = arith.constant 2 : index
    %c0_38 = arith.constant 0 : index
    %c0_39 = arith.constant 0 : index
    %71 = vector.load %arg8[%c2_37, %c0_38, %c0_39] : memref<4x8x8xbf16, #tpu.memory_space<vmem>>, vector<1x8x8xbf16>
    %72 = vector.shape_cast %71 : vector<1x8x8xbf16> to vector<8x8xbf16>
    %73 = vector.shape_cast %70 : vector<8x8xbf16> to vector<1x8x8xbf16>
    tpu.vector_store %arg8[%c2_37, %c0_38, %c0_39], %73 {strides = array<i32>} : memref<4x8x8xbf16, #tpu.memory_space<vmem>>, vector<1x8x8xbf16>,
    %74 = vector.extract_strided_slice %32 {offsets = [0, 56], sizes = [8, 8], strides = [1, 1]} : vector<8x96xf32> to vector<8x8xf32>
    %75 = arith.truncf %74 : vector<8x8xf32> to vector<8x8xbf16>
    %c2_40 = arith.constant 2 : index
    %c0_41 = arith.constant 0 : index
    %c0_42 = arith.constant 0 : index
    %76 = vector.load %arg9[%c2_40, %c0_41, %c0_42] : memref<4x8x8xbf16, #tpu.memory_space<vmem>>, vector<1x8x8xbf16>
    %77 = vector.shape_cast %76 : vector<1x8x8xbf16> to vector<8x8xbf16>
    %78 = vector.shape_cast %75 : vector<8x8xbf16> to vector<1x8x8xbf16>
    tpu.vector_store %arg9[%c2_40, %c0_41, %c0_42], %78 {strides = array<i32>} : memref<4x8x8xbf16, #tpu.memory_space<vmem>>, vector<1x8x8xbf16>,
    %79 = vector.extract_strided_slice %32 {offsets = [0, 64], sizes = [8, 8], strides = [1, 1]} : vector<8x96xf32> to vector<8x8xf32>
    %80 = arith.truncf %79 : vector<8x8xf32> to vector<8x8xbf16>
    %c2_43 = arith.constant 2 : index
    %c0_44 = arith.constant 0 : index
    %c0_45 = arith.constant 0 : index
    %81 = vector.load %arg10[%c2_43, %c0_44, %c0_45] : memref<4x8x8xbf16, #tpu.memory_space<vmem>>, vector<1x8x8xbf16>
    %82 = vector.shape_cast %81 : vector<1x8x8xbf16> to vector<8x8xbf16>
    %83 = vector.shape_cast %80 : vector<8x8xbf16> to vector<1x8x8xbf16>
    tpu.vector_store %arg10[%c2_43, %c0_44, %c0_45], %83 {strides = array<i32>} : memref<4x8x8xbf16, #tpu.memory_space<vmem>>, vector<1x8x8xbf16>,
    %84 = vector.extract_strided_slice %32 {offsets = [0, 72], sizes = [8, 8], strides = [1, 1]} : vector<8x96xf32> to vector<8x8xf32>
    %cst_46 = arith.constant 0.353553385 : f32
    %85 = vector.broadcast %cst_46 : f32 to vector<8x8xf32>
    %86 = arith.mulf %84, %85 : vector<8x8xf32>
    %87 = arith.truncf %86 : vector<8x8xf32> to vector<8x8xbf16>
    %c3_47 = arith.constant 3 : index
    %c0_48 = arith.constant 0 : index
    %c0_49 = arith.constant 0 : index
    %88 = vector.load %arg8[%c3_47, %c0_48, %c0_49] : memref<4x8x8xbf16, #tpu.memory_space<vmem>>, vector<1x8x8xbf16>
    %89 = vector.shape_cast %88 : vector<1x8x8xbf16> to vector<8x8xbf16>
    %90 = vector.shape_cast %87 : vector<8x8xbf16> to vector<1x8x8xbf16>
    tpu.vector_store %arg8[%c3_47, %c0_48, %c0_49], %90 {strides = array<i32>} : memref<4x8x8xbf16, #tpu.memory_space<vmem>>, vector<1x8x8xbf16>,
    %91 = vector.extract_strided_slice %32 {offsets = [0, 80], sizes = [8, 8], strides = [1, 1]} : vector<8x96xf32> to vector<8x8xf32>
    %92 = arith.truncf %91 : vector<8x8xf32> to vector<8x8xbf16>
    %c3_50 = arith.constant 3 : index
    %c0_51 = arith.constant 0 : index
    %c0_52 = arith.constant 0 : index
    %93 = vector.load %arg9[%c3_50, %c0_51, %c0_52] : memref<4x8x8xbf16, #tpu.memory_space<vmem>>, vector<1x8x8xbf16>
    %94 = vector.shape_cast %93 : vector<1x8x8xbf16> to vector<8x8xbf16>
    %95 = vector.shape_cast %92 : vector<8x8xbf16> to vector<1x8x8xbf16>
    tpu.vector_store %arg9[%c3_50, %c0_51, %c0_52], %95 {strides = array<i32>} : memref<4x8x8xbf16, #tpu.memory_space<vmem>>, vector<1x8x8xbf16>,
    %96 = vector.extract_strided_slice %32 {offsets = [0, 88], sizes = [8, 8], strides = [1, 1]} : vector<8x96xf32> to vector<8x8xf32>
    %97 = arith.truncf %96 : vector<8x8xf32> to vector<8x8xbf16>
    %c3_53 = arith.constant 3 : index
    %c0_54 = arith.constant 0 : index
    %c0_55 = arith.constant 0 : index
    %98 = vector.load %arg10[%c3_53, %c0_54, %c0_55] : memref<4x8x8xbf16, #tpu.memory_space<vmem>>, vector<1x8x8xbf16>
    %99 = vector.shape_cast %98 : vector<1x8x8xbf16> to vector<8x8xbf16>
    %100 = vector.shape_cast %97 : vector<8x8xbf16> to vector<1x8x8xbf16>
    tpu.vector_store %arg10[%c3_53, %c0_54, %c0_55], %100 {strides = array<i32>} : memref<4x8x8xbf16, #tpu.memory_space<vmem>>, vector<1x8x8xbf16>,
    %c0_56 = arith.constant 0 : index
    %c0_57 = arith.constant 0 : index
    %c0_58 = arith.constant 0 : index
    %101 = vector.load %arg8[%c0_56, %c0_57, %c0_58] : memref<4x8x8xbf16, #tpu.memory_space<vmem>>, vector<4x8x8xbf16>
    %c0_59 = arith.constant 0 : index
    %c0_60 = arith.constant 0 : index
    %c0_61 = arith.constant 0 : index
    %102 = vector.load %arg9[%c0_59, %c0_60, %c0_61] : memref<4x8x8xbf16, #tpu.memory_space<vmem>>, vector<4x8x8xbf16>
    %c0_62 = arith.constant 0 : index
    %c0_63 = arith.constant 0 : index
    %c0_64 = arith.constant 0 : index
    %103 = vector.load %arg10[%c0_62, %c0_63, %c0_64] : memref<4x8x8xbf16, #tpu.memory_space<vmem>>, vector<4x8x8xbf16>
    %104 = tpu.iota {dimensions = array<i32: 0>} : vector<8x8xi32>
    %105 = tpu.iota {dimensions = array<i32: 1>} : vector<8x8xi32>
    %106 = arith.cmpi sle, %105, %104 : vector<8x8xi32>
    %cst_65 = arith.constant 0.000000e+00 : f32
    %cst_66 = arith.constant -1.000000e+30 : f32
    %107 = vector.broadcast %cst_65 : f32 to vector<8x8xf32>
    %108 = vector.broadcast %cst_66 : f32 to vector<8x8xf32>
    %109 = arith.select %106, %107, %108 : vector<8x8xi1>, vector<8x8xf32>
    "tpu.trace_start"() <{level = 10 : i32, message = "hmk,hnk->hmn"}> : () -> ()
    %cst_67 = arith.constant dense<0.000000e+00> : vector<4x8x8xf32>
    %110 = tpu.matmul %101, %102, %cst_67 {dimension_numbers = #tpu.dot_dimension_numbers<[2], [2], [1], [1], [0, 0, 0, 1, 1, 1], [0], [0]>} : vector<4x8x8xbf16>, vector<4x8x8xbf16>, vector<4x8x8xf32> -> vector<4x8x8xf32>
    "tpu.trace_stop"() : () -> ()
    %111 = vector.shape_cast %109 : vector<8x8xf32> to vector<1x8x8xf32>
    %112 = vector.broadcast %111 : vector<1x8x8xf32> to vector<4x8x8xf32>
    %113 = arith.addf %110, %112 : vector<4x8x8xf32>
    %cst_68 = arith.constant dense<0xFF800000> : vector<4x8xf32>
    %114 = vector.multi_reduction <maximumf>, %113, %cst_68 [2] : vector<4x8x8xf32> to vector<4x8xf32>
    %115 = vector.shape_cast %114 : vector<4x8xf32> to vector<4x8x1xf32>
    %116 = vector.broadcast %115 : vector<4x8x1xf32> to vector<4x8x8xf32>
    %117 = arith.subf %113, %116 : vector<4x8x8xf32>
    %118 = math.exp %117 : vector<4x8x8xf32>
    %cst_69 = arith.constant dense<0.000000e+00> : vector<4x8xf32>
    %119 = vector.multi_reduction <add>, %118, %cst_69 [2] : vector<4x8x8xf32> to vector<4x8xf32>
    %120 = vector.shape_cast %119 : vector<4x8xf32> to vector<4x8x1xf32>
    %121 = tpu.reciprocal %120 {approx = true} : vector<4x8x1xf32> -> vector<4x8x1xf32>
    %122 = vector.broadcast %121 : vector<4x8x1xf32> to vector<4x8x8xf32>
    %123 = arith.mulf %118, %122 : vector<4x8x8xf32>
    %124 = arith.truncf %123 : vector<4x8x8xf32> to vector<4x8x8xbf16>
    "tpu.trace_start"() <{level = 10 : i32, message = "hmn,hnk->hmk"}> : () -> ()
    %cst_70 = arith.constant dense<0.000000e+00> : vector<4x8x8xf32>
    %125 = tpu.matmul %124, %103, %cst_70 {dimension_numbers = #tpu.dot_dimension_numbers<[2], [1], [1], [2], [0, 0, 0, 1, 1, 2], [0], [0]>} : vector<4x8x8xbf16>, vector<4x8x8xbf16>, vector<4x8x8xf32> -> vector<4x8x8xf32>
    "tpu.trace_stop"() : () -> ()
    %126 = arith.truncf %125 : vector<4x8x8xf32> to vector<4x8x8xbf16>
    %cst_71 = arith.constant 0.000000e+00 : f32
    %127 = vector.broadcast %cst_71 : f32 to vector<8x32xf32>
    %128 = vector.extract_strided_slice %126 {offsets = [0, 0, 0], sizes = [1, 8, 8], strides = [1, 1, 1]} : vector<4x8x8xbf16> to vector<1x8x8xbf16>
    %129 = vector.shape_cast %128 : vector<1x8x8xbf16> to vector<8x8xbf16>
    %c0_72 = arith.constant 0 : index
    %c0_73 = arith.constant 0 : index
    %c0_74 = arith.constant 0 : index
    %130 = vector.load %arg3[%c0_72, %c0_73, %c0_74] : memref<4x8x32xbf16, #tpu.memory_space<vmem>>, vector<1x8x32xbf16>
    %131 = vector.shape_cast %130 : vector<1x8x32xbf16> to vector<8x32xbf16>
    %cst_75 = arith.constant dense<0.000000e+00> : vector<8x32xf32>
    %132 = tpu.matmul %129, %131, %cst_75 {dimension_numbers = #tpu.dot_dimension_numbers<[1], [0], [0], [1], [0, 0, 1, 1], [], []>} : vector<8x8xbf16>, vector<8x32xbf16>, vector<8x32xf32> -> vector<8x32xf32>
    %133 = arith.addf %127, %132 : vector<8x32xf32>
    %134 = vector.extract_strided_slice %126 {offsets = [1, 0, 0], sizes = [1, 8, 8], strides = [1, 1, 1]} : vector<4x8x8xbf16> to vector<1x8x8xbf16>
    %135 = vector.shape_cast %134 : vector<1x8x8xbf16> to vector<8x8xbf16>
    %c1_76 = arith.constant 1 : index
    %c0_77 = arith.constant 0 : index
    %c0_78 = arith.constant 0 : index
    %136 = vector.load %arg3[%c1_76, %c0_77, %c0_78] : memref<4x8x32xbf16, #tpu.memory_space<vmem>>, vector<1x8x32xbf16>
    %137 = vector.shape_cast %136 : vector<1x8x32xbf16> to vector<8x32xbf16>
    %cst_79 = arith.constant dense<0.000000e+00> : vector<8x32xf32>
    %138 = tpu.matmul %135, %137, %cst_79 {dimension_numbers = #tpu.dot_dimension_numbers<[1], [0], [0], [1], [0, 0, 1, 1], [], []>} : vector<8x8xbf16>, vector<8x32xbf16>, vector<8x32xf32> -> vector<8x32xf32>
    %139 = arith.addf %133, %138 : vector<8x32xf32>
    %140 = vector.extract_strided_slice %126 {offsets = [2, 0, 0], sizes = [1, 8, 8], strides = [1, 1, 1]} : vector<4x8x8xbf16> to vector<1x8x8xbf16>
    %141 = vector.shape_cast %140 : vector<1x8x8xbf16> to vector<8x8xbf16>
    %c2_80 = arith.constant 2 : index
    %c0_81 = arith.constant 0 : index
    %c0_82 = arith.constant 0 : index
    %142 = vector.load %arg3[%c2_80, %c0_81, %c0_82] : memref<4x8x32xbf16, #tpu.memory_space<vmem>>, vector<1x8x32xbf16>
    %143 = vector.shape_cast %142 : vector<1x8x32xbf16> to vector<8x32xbf16>
    %cst_83 = arith.constant dense<0.000000e+00> : vector<8x32xf32>
    %144 = tpu.matmul %141, %143, %cst_83 {dimension_numbers = #tpu.dot_dimension_numbers<[1], [0], [0], [1], [0, 0, 1, 1], [], []>} : vector<8x8xbf16>, vector<8x32xbf16>, vector<8x32xf32> -> vector<8x32xf32>
    %145 = arith.addf %139, %144 : vector<8x32xf32>
    %146 = vector.extract_strided_slice %126 {offsets = [3, 0, 0], sizes = [1, 8, 8], strides = [1, 1, 1]} : vector<4x8x8xbf16> to vector<1x8x8xbf16>
    %147 = vector.shape_cast %146 : vector<1x8x8xbf16> to vector<8x8xbf16>
    %c3_84 = arith.constant 3 : index
    %c0_85 = arith.constant 0 : index
    %c0_86 = arith.constant 0 : index
    %148 = vector.load %arg3[%c3_84, %c0_85, %c0_86] : memref<4x8x32xbf16, #tpu.memory_space<vmem>>, vector<1x8x32xbf16>
    %149 = vector.shape_cast %148 : vector<1x8x32xbf16> to vector<8x32xbf16>
    %cst_87 = arith.constant dense<0.000000e+00> : vector<8x32xf32>
    %150 = tpu.matmul %147, %149, %cst_87 {dimension_numbers = #tpu.dot_dimension_numbers<[1], [0], [0], [1], [0, 0, 1, 1], [], []>} : vector<8x8xbf16>, vector<8x32xbf16>, vector<8x32xf32> -> vector<8x32xf32>
    %151 = arith.addf %145, %150 : vector<8x32xf32>
    %152 = arith.addf %1, %151 : vector<8x32xf32>
    %cst_88 = arith.constant dense<0.000000e+00> : vector<8xf32>
    %153 = vector.multi_reduction <add>, %152, %cst_88 [1] : vector<8x32xf32> to vector<8xf32>
    %154 = vector.shape_cast %153 : vector<8xf32> to vector<8x1xf32>
    %cst_89 = arith.constant 3.200000e+01 : f32
    %155 = vector.broadcast %cst_89 : f32 to vector<8x1xf32>
    %156 = arith.divf %154, %155 : vector<8x1xf32>
    %157 = vector.broadcast %156 : vector<8x1xf32> to vector<8x32xf32>
    %158 = arith.subf %152, %157 : vector<8x32xf32>
    %159 = arith.mulf %158, %158 : vector<8x32xf32>
    %cst_90 = arith.constant dense<0.000000e+00> : vector<8xf32>
    %160 = vector.multi_reduction <add>, %159, %cst_90 [1] : vector<8x32xf32> to vector<8xf32>
    %161 = vector.shape_cast %160 : vector<8xf32> to vector<8x1xf32>
    %cst_91 = arith.constant 3.200000e+01 : f32
    %162 = vector.broadcast %cst_91 : f32 to vector<8x1xf32>
    %163 = arith.divf %161, %162 : vector<8x1xf32>
    %164 = vector.broadcast %156 : vector<8x1xf32> to vector<8x32xf32>
    %165 = arith.subf %152, %164 : vector<8x32xf32>
    %cst_92 = arith.constant 9.99999974E-6 : f32
    %166 = vector.broadcast %cst_92 : f32 to vector<8x1xf32>
    %167 = arith.addf %163, %166 : vector<8x1xf32>
    %168 = math.rsqrt %167 : vector<8x1xf32>
    %169 = vector.broadcast %168 : vector<8x1xf32> to vector<8x32xf32>
    %170 = arith.mulf %165, %169 : vector<8x32xf32>
    %171 = vector.broadcast %4 : vector<1x32xf32> to vector<8x32xf32>
    %172 = arith.mulf %170, %171 : vector<8x32xf32>
    %173 = vector.broadcast %5 : vector<1x32xf32> to vector<8x32xf32>
    %174 = arith.addf %172, %173 : vector<8x32xf32>
    %175 = arith.truncf %174 : vector<8x32xf32> to vector<8x32xbf16>
    %c0_93 = arith.constant 0 : index
    %c0_94 = arith.constant 0 : index
    %176 = vector.load %arg4[%c0_93, %c0_94] : memref<32x128xbf16, #tpu.memory_space<vmem>>, vector<32x128xbf16>
    %cst_95 = arith.constant dense<0.000000e+00> : vector<8x128xf32>
    %177 = tpu.matmul %175, %176, %cst_95 {dimension_numbers = #tpu.dot_dimension_numbers<[1], [0], [0], [1], [0, 0, 1, 1], [], []>} : vector<8x32xbf16>, vector<32x128xbf16>, vector<8x128xf32> -> vector<8x128xf32>
    %178 = vector.broadcast %7 : vector<1x128xf32> to vector<8x128xf32>
    %179 = arith.addf %177, %178 : vector<8x128xf32>
    %cst_96 = arith.constant 5.000000e-01 : f32
    %180 = vector.broadcast %cst_96 : f32 to vector<8x128xf32>
    %181 = arith.mulf %180, %179 : vector<8x128xf32>
    %182 = arith.mulf %179, %179 : vector<8x128xf32>
    %183 = arith.mulf %179, %182 : vector<8x128xf32>
    %cst_97 = arith.constant 4.471500e-02 : f32
    %184 = vector.broadcast %cst_97 : f32 to vector<8x128xf32>
    %185 = arith.mulf %184, %183 : vector<8x128xf32>
    %186 = arith.addf %179, %185 : vector<8x128xf32>
    %cst_98 = arith.constant 0.797884583 : f32
    %187 = vector.broadcast %cst_98 : f32 to vector<8x128xf32>
    %188 = arith.mulf %187, %186 : vector<8x128xf32>
    %189 = math.tanh %188 : vector<8x128xf32>
    %cst_99 = arith.constant 1.000000e+00 : f32
    %190 = vector.broadcast %cst_99 : f32 to vector<8x128xf32>
    %191 = arith.addf %190, %189 : vector<8x128xf32>
    %192 = arith.mulf %181, %191 : vector<8x128xf32>
    %193 = arith.truncf %192 : vector<8x128xf32> to vector<8x128xbf16>
    %c0_100 = arith.constant 0 : index
    %c0_101 = arith.constant 0 : index
    %194 = vector.load %arg5[%c0_100, %c0_101] : memref<128x32xbf16, #tpu.memory_space<vmem>>, vector<128x32xbf16>
    %cst_102 = arith.constant dense<0.000000e+00> : vector<8x32xf32>
    %195 = tpu.matmul %193, %194, %cst_102 {dimension_numbers = #tpu.dot_dimension_numbers<[1], [0], [0], [1], [0, 0, 1, 1], [], []>} : vector<8x128xbf16>, vector<128x32xbf16>, vector<8x32xf32> -> vector<8x32xf32>
    %196 = vector.broadcast %6 : vector<1x32xf32> to vector<8x32xf32>
    %197 = arith.addf %195, %196 : vector<8x32xf32>
    %198 = arith.addf %152, %197 : vector<8x32xf32>
    %c0_103 = arith.constant 0 : index
    %c0_104 = arith.constant 0 : index
    %c0_105 = arith.constant 0 : index
    %199 = vector.load %arg7[%c0_103, %c0_104, %c0_105] : memref<1x8x32xf32, #tpu.memory_space<vmem>>, vector<1x8x32xf32>
    %200 = vector.shape_cast %199 : vector<1x8x32xf32> to vector<8x32xf32>
    %201 = vector.shape_cast %198 : vector<8x32xf32> to vector<1x8x32xf32>
    tpu.vector_store %arg7[%c0_103, %c0_104, %c0_105], %201 {strides = array<i32>} : memref<1x8x32xf32, #tpu.memory_space<vmem>>, vector<1x8x32xf32>,
    return
  }
  func.func @transform_0(%arg0: i32) -> (i32, i32, i32) {
    %c0_i32 = arith.constant 0 : i32
    %c0_i32_0 = arith.constant 0 : i32
    %c0_i32_1 = arith.constant 0 : i32
    return %arg0, %c0_i32, %c0_i32_0 : i32, i32, i32
  }
  func.func @transform_1(%arg0: i32) -> (i32, i32) {
    %c0_i32 = arith.constant 0 : i32
    %c0_i32_0 = arith.constant 0 : i32
    %c0_i32_1 = arith.constant 0 : i32
    return %c0_i32, %c0_i32_0 : i32, i32
  }
  func.func @transform_2(%arg0: i32) -> (i32, i32, i32) {
    %c0_i32 = arith.constant 0 : i32
    %c0_i32_0 = arith.constant 0 : i32
    %c0_i32_1 = arith.constant 0 : i32
    %c0_i32_2 = arith.constant 0 : i32
    return %c0_i32, %c0_i32_0, %c0_i32_1 : i32, i32, i32
  }
  func.func @transform_3(%arg0: i32) -> (i32, i32) {
    %c0_i32 = arith.constant 0 : i32
    %c0_i32_0 = arith.constant 0 : i32
    %c0_i32_1 = arith.constant 0 : i32
    return %c0_i32, %c0_i32_0 : i32, i32
  }
  func.func @transform_4(%arg0: i32) -> (i32, i32) {
    %c0_i32 = arith.constant 0 : i32
    %c0_i32_0 = arith.constant 0 : i32
    %c0_i32_1 = arith.constant 0 : i32
    return %c0_i32, %c0_i32_0 : i32, i32
  }
  func.func @transform_5(%arg0: i32) -> (i32, i32) {
    %c0_i32 = arith.constant 0 : i32
    %c0_i32_0 = arith.constant 0 : i32
    %c0_i32_1 = arith.constant 0 : i32
    return %c0_i32, %c0_i32_0 : i32, i32
  }
  func.func @transform_6(%arg0: i32) -> (i32, i32, i32) {
    %c0_i32 = arith.constant 0 : i32
    %c0_i32_0 = arith.constant 0 : i32
    %c0_i32_1 = arith.constant 0 : i32
    return %arg0, %c0_i32, %c0_i32_0 : i32, i32, i32
  }
}

</mosaic_0001>

<llo_original>
// kernel: tpu_custom_call.1
$region0: #{tpu_custom_call.1}
  #allocation0 [shape = 'u32[]', space=smem, size = 0x4, offset = 0x4, fixed_abs, tag = 'smem constant byte address 0x4 - core index']
  #allocation1 [shape = 'u32[144,128]{1,0:T(1,128)}', space=vmem, size = 0x12000, scoped, tag = 'internal scratch']
  #allocation2 [shape = 'bf16[4,8,8]{2,1,0:T(8,128)(2,1)}', space=vmem, size = 0x2000, scoped, tag = 'scratch operand']
  #allocation3 [shape = 'bf16[4,8,8]{2,1,0:T(8,128)(2,1)}', space=vmem, size = 0x2000, scoped, tag = 'scratch operand']
  #allocation4 [shape = 'bf16[4,8,8]{2,1,0:T(8,128)(2,1)}', space=vmem, size = 0x2000, scoped, tag = 'scratch operand']
  %s0 = inlined_call_operand.vmem [shape: f32[2,8,32], index: 0, kind: input, shape index: {}]
  %s1 = inlined_call_operand.vmem [shape: bf16[32,96], index: 1, kind: input, shape index: {}]
  %s2 = inlined_call_operand.vmem [shape: bf16[4,8,32], index: 2, kind: input, shape index: {}]
  %s3 = inlined_call_operand.vmem [shape: bf16[32,128], index: 3, kind: input, shape index: {}]
  %s4 = inlined_call_operand.vmem [shape: bf16[128,32], index: 4, kind: input, shape index: {}]
  %s5 = inlined_call_operand.vmem [shape: f32[8,128], index: 5, kind: input, shape index: {}]
  %s6 = inlined_call_operand.hbm [shape: f32[2,8,32], index: 6, kind: output, shape index: {}]
  %s7 = sld [smem:[#allocation0]]
  $region57: #{tpu_custom_call.1} parent=0
    _
  %s9 = ssub.s32 1, %s7
  %s10 = scalar_select 0, %s9, %s7
  $region1: #{tpu_custom_call.1} parent=0
    #allocation5 [shape = 'u8[8192]{0}', space=vmem, size = 0x2000, scoped, tag = 'output window, operand 0']
    #allocation6 [shape = 's32[2]{0}', space=sflag, size = 0x8, scoped, tag = 'scoped memory for tpu_custom_call.1']
    %11 = vsyncpa [#allocation6], 0
    %s12 = scalar_lea.sflag [#allocation6], 1
    %13 = vsyncpa %s12, 0
    loop: start=0, step=1, limit=4
    $region2: #{tpu_custom_call.1} parent=1 // loop_pre_header
      _
    $region3: #{tpu_custom_call.1} parent=1 // loop_header
      %s15 = sphi 0, %s19
      %p16 = scmp.ge.s32.totalorder %s15, 4
      %s25 = sphi 0, %s27
      %s28 = sphi 0, %s25
      %s29 = sphi 0, %s28
      %s45 = sphi 0, %s29
      %s49 = sphi 0, %s49
      %s51 = sphi 0, %s49
      %s52 = sphi 0, %s51
      %s66 = sphi 0, %s52
      %s70 = sphi 0, %s70
      %s72 = sphi 0, %s70
      %s73 = sphi 0, %s72
      %s87 = sphi 0, %s73
      %s91 = sphi 0, %s91
      %s93 = sphi 0, %s91
      %s94 = sphi 0, %s93
      %s108 = sphi 0, %s94
      %s112 = sphi 0, %s112
      %s114 = sphi 0, %s112
      %s115 = sphi 0, %s114
      %s129 = sphi 0, %s115
      %s133 = sphi 0, %s133
      %s135 = sphi 0, %s133
      %s136 = sphi 0, %s135
      %s150 = sphi 0, %s136
      %s156 = sphi 0, %s158
      %s159 = sphi 0, %s156
      %s160 = sphi 0, %s159
      %s176 = sphi 0, %s160
    $region4: #{tpu_custom_call.1} parent=1 // loop_header_branch
      %18 = sbr.rel (%p16) target = $region8
    $region5: #{tpu_custom_call.1} parent=1 // loop_body
      %s20 = ssub.s32 %s15, 1
      %s21 = ssub.s32 %s15, 2
      %s22 = sadd.s32 %s15, 1
      %s23 = ssub.s32 %s15, %s22
      %p24 = scmp.eq.s32.totalorder %s23, 0
      %s26 = sadd.s32 %s25, 1
      %s27 = scalar_select %p24, %s25, %s26
      %p30 = pneg %p24
      %p31 = scmp.eq.s32.totalorder %s15, 1
      %p32 = por %p30, %p31
      %p33 = scmp.ne.s32.totalorder %s25, %s28
      %p34 = scmp.eq.s32.totalorder %s15, 0
      %p35 = por %p33, %p34
      %p36 = scmp.ne.s32.totalorder %s25, %s28
      %p37 = scmp.eq.s32.totalorder %s20, 1
      %p38 = por %p36, %p37
      %p39 = scmp.ne.s32.totalorder %s28, %s29
      %p40 = scmp.eq.s32.totalorder %s20, 0
      %p41 = por %p39, %p40
      %p42 = scmp.ne.s32.totalorder %s28, %s29
      %p43 = scmp.eq.s32.totalorder %s21, 1
      %p44 = por %p42, %p43
      %p46 = scmp.ne.s32.totalorder %s29, %s45
      %p47 = scmp.eq.s32.totalorder %s21, 0
      %p48 = por %p46, %p47
      %s50 = sadd.s32 %s49, 1
      %p53 = scmp.eq.s32.totalorder %s15, 1
      %p54 = scmp.ne.s32.totalorder %s49, %s51
      %p55 = scmp.eq.s32.totalorder %s15, 0
      %p56 = por %p54, %p55
      %p57 = scmp.ne.s32.totalorder %s49, %s51
      %p58 = scmp.eq.s32.totalorder %s20, 1
      %p59 = por %p57, %p58
      %p60 = scmp.ne.s32.totalorder %s51, %s52
      %p61 = scmp.eq.s32.totalorder %s20, 0
      %p62 = por %p60, %p61
      %p63 = scmp.ne.s32.totalorder %s51, %s52
      %p64 = scmp.eq.s32.totalorder %s21, 1
      %p65 = por %p63, %p64
      %p67 = scmp.ne.s32.totalorder %s52, %s66
      %p68 = scmp.eq.s32.totalorder %s21, 0
      %p69 = por %p67, %p68
      %s71 = sadd.s32 %s70, 1
      %p74 = scmp.eq.s32.totalorder %s15, 1
      %p75 = scmp.ne.s32.totalorder %s70, %s72
      %p76 = scmp.eq.s32.totalorder %s15, 0
      %p77 = por %p75, %p76
      %p78 = scmp.ne.s32.totalorder %s70, %s72
      %p79 = scmp.eq.s32.totalorder %s20, 1
      %p80 = por %p78, %p79
      %p81 = scmp.ne.s32.totalorder %s72, %s73
      %p82 = scmp.eq.s32.totalorder %s20, 0
      %p83 = por %p81, %p82
      %p84 = scmp.ne.s32.totalorder %s72, %s73
      %p85 = scmp.eq.s32.totalorder %s21, 1
      %p86 = por %p84, %p85
      %p88 = scmp.ne.s32.totalorder %s73, %s87
      %p89 = scmp.eq.s32.totalorder %s21, 0
      %p90 = por %p88, %p89
      %s92 = sadd.s32 %s91, 1
      %p95 = scmp.eq.s32.totalorder %s15, 1
      %p96 = scmp.ne.s32.totalorder %s91, %s93
      %p97 = scmp.eq.s32.totalorder %s15, 0
      %p98 = por %p96, %p97
      %p99 = scmp.ne.s32.totalorder %s91, %s93
      %p100 = scmp.eq.s32.totalorder %s20, 1
      %p101 = por %p99, %p100
      %p102 = scmp.ne.s32.totalorder %s93, %s94
      %p103 = scmp.eq.s32.totalorder %s20, 0
      %p104 = por %p102, %p103
      %p105 = scmp.ne.s32.totalorder %s93, %s94
      %p106 = scmp.eq.s32.totalorder %s21, 1
      %p107 = por %p105, %p106
      %p109 = scmp.ne.s32.totalorder %s94, %s108
      %p110 = scmp.eq.s32.totalorder %s21, 0
      %p111 = por %p109, %p110
      %s113 = sadd.s32 %s112, 1
      %p116 = scmp.eq.s32.totalorder %s15, 1
      %p117 = scmp.ne.s32.totalorder %s112, %s114
      %p118 = scmp.eq.s32.totalorder %s15, 0
      %p119 = por %p117, %p118
      %p120 = scmp.ne.s32.totalorder %s112, %s114
      %p121 = scmp.eq.s32.totalorder %s20, 1
      %p122 = por %p120, %p121
      %p123 = scmp.ne.s32.totalorder %s114, %s115
      %p124 = scmp.eq.s32.totalorder %s20, 0
      %p125 = por %p123, %p124
      %p126 = scmp.ne.s32.totalorder %s114, %s115
      %p127 = scmp.eq.s32.totalorder %s21, 1
      %p128 = por %p126, %p127
      %p130 = scmp.ne.s32.totalorder %s115, %s129
      %p131 = scmp.eq.s32.totalorder %s21, 0
      %p132 = por %p130, %p131
      %s134 = sadd.s32 %s133, 1
      %p137 = scmp.eq.s32.totalorder %s15, 1
      %p138 = scmp.ne.s32.totalorder %s133, %s135
      %p139 = scmp.eq.s32.totalorder %s15, 0
      %p140 = por %p138, %p139
      %p141 = scmp.ne.s32.totalorder %s133, %s135
      %p142 = scmp.eq.s32.totalorder %s20, 1
      %p143 = por %p141, %p142
      %p144 = scmp.ne.s32.totalorder %s135, %s136
      %p145 = scmp.eq.s32.totalorder %s20, 0
      %p146 = por %p144, %p145
      %p147 = scmp.ne.s32.totalorder %s135, %s136
      %p148 = scmp.eq.s32.totalorder %s21, 1
      %p149 = por %p147, %p148
      %p151 = scmp.ne.s32.totalorder %s136, %s150
      %p152 = scmp.eq.s32.totalorder %s21, 0
      %p153 = por %p151, %p152
      %s154 = ssub.s32 %s15, %s22
      %p155 = scmp.eq.s32.totalorder %s154, 0
      %s157 = sadd.s32 %s156, 1
      %s158 = scalar_select %p155, %s156, %s157
      %p161 = pneg %p155
      %p162 = scmp.eq.s32.totalorder %s15, 1
      %p163 = por %p161, %p162
      %p164 = scmp.ne.s32.totalorder %s156, %s159
      %p165 = scmp.eq.s32.totalorder %s15, 0
      %p166 = por %p164, %p165
      %p167 = scmp.ne.s32.totalorder %s156, %s159
      %p168 = scmp.eq.s32.totalorder %s20, 1
      %p169 = por %p167, %p168
      %p170 = scmp.ne.s32.totalorder %s159, %s160
      %p171 = scmp.eq.s32.totalorder %s20, 0
      %p172 = por %p170, %p171
      %p173 = scmp.ne.s32.totalorder %s159, %s160
      %p174 = scmp.eq.s32.totalorder %s21, 1
      %p175 = por %p173, %p174
      %p177 = scmp.ne.s32.totalorder %s160, %s176
      %p178 = scmp.eq.s32.totalorder %s21, 0
      %p179 = por %p177, %p178
      %p180 = scmp.le.s32.totalorder 1, %s15
      %p181 = scmp.lt.s32.totalorder %s15, 3
      %p182 = pnand %p180, %p181
      %p183 = pneg %p182
      // Predicated region
      $region9: #{tpu_custom_call.1} parent=5 // pred_check
        _
      $region10: #{tpu_custom_call.1} parent=5 // pred_check_branch
        %185 = sbr.rel (%p182) target = $region12
      $region11: #{tpu_custom_call.1} parent=5 // pred_region
        %s186 = ssub.s32 %s15, 1
        // Predicated region
        $region13: #{tpu_custom_call.1} parent=11 // pred_check
          %p187 = pneg %p62
        $region14: #{tpu_custom_call.1} parent=11 // pred_check_branch
          %189 = sbr.rel (%p187) target = $region16
        $region15: #{tpu_custom_call.1} parent=11 // pred_region
          _
        $region16: #{tpu_custom_call.1} parent=11 // pred_fallthru
          _
        // Predicated region
        $region17: #{tpu_custom_call.1} parent=11 // pred_check
          %p190 = pneg %p83
        $region18: #{tpu_custom_call.1} parent=11 // pred_check_branch
          %192 = sbr.rel (%p190) target = $region20
        $region19: #{tpu_custom_call.1} parent=11 // pred_region
          _
        $region20: #{tpu_custom_call.1} parent=11 // pred_fallthru
          _
        // Predicated region
        $region21: #{tpu_custom_call.1} parent=11 // pred_check
          %p193 = pneg %p104
        $region22: #{tpu_custom_call.1} parent=11 // pred_check_branch
          %195 = sbr.rel (%p193) target = $region24
        $region23: #{tpu_custom_call.1} parent=11 // pred_region
          _
        $region24: #{tpu_custom_call.1} parent=11 // pred_fallthru
          _
        // Predicated region
        $region25: #{tpu_custom_call.1} parent=11 // pred_check
          %p196 = pneg %p125
        $region26: #{tpu_custom_call.1} parent=11 // pred_check_branch
          %198 = sbr.rel (%p196) target = $region28
        $region27: #{tpu_custom_call.1} parent=11 // pred_region
          _
        $region28: #{tpu_custom_call.1} parent=11 // pred_fallthru
          _
        // Predicated region
        $region29: #{tpu_custom_call.1} parent=11 // pred_check
          %p199 = pneg %p146
        $region30: #{tpu_custom_call.1} parent=11 // pred_check_branch
          %201 = sbr.rel (%p199) target = $region32
        $region31: #{tpu_custom_call.1} parent=11 // pred_region
          _
        $region32: #{tpu_custom_call.1} parent=11 // pred_fallthru
          _
      $region12: #{tpu_custom_call.1} parent=5 // pred_fallthru
        _
      %p202 = scmp.lt.s32.totalorder %s15, 2
      // Predicated region
      $region33: #{tpu_custom_call.1} parent=5 // pred_check
        %p203 = pneg %p202
      $region34: #{tpu_custom_call.1} parent=5 // pred_check_branch
        %205 = sbr.rel (%p203) target = $region36
      $region35: #{tpu_custom_call.1} parent=5 // pred_region
        // Predicated region
        $region37: #{tpu_custom_call.1} parent=35 // pred_check
          %p206 = pneg %p35
        $region38: #{tpu_custom_call.1} parent=35 // pred_check_branch
          %208 = sbr.rel (%p206) target = $region40
        $region39: #{tpu_custom_call.1} parent=35 // pred_region
          %p209 = scmp.lt.s32.totalorder %s15, 1
          %s210 = scalar_select %p209, %s15, 1
          %s211 = smul.addr %s210, 8
          %s212 = scalar_lea.vmem %s0, %s211
        $region40: #{tpu_custom_call.1} parent=35 // pred_fallthru
          _
      $region36: #{tpu_custom_call.1} parent=5 // pred_fallthru
        _
      %p213 = scmp.le.s32.totalorder 1, %s15
      %p214 = scmp.lt.s32.totalorder %s15, 3
      %p215 = pnand %p213, %p214
      %p216 = pneg %p215
      // Predicated region
      $region41: #{tpu_custom_call.1} parent=5 // pred_check
        _
      $region42: #{tpu_custom_call.1} parent=5 // pred_check_branch
        %218 = sbr.rel (%p215) target = $region44
      $region43: #{tpu_custom_call.1} parent=5 // pred_region
        %s219 = ssub.s32 %s15, 1
        %p220 = scmp.lt.s32.totalorder %s20, 1
        %s221 = scalar_select %p220, %s20, 1
        %s222 = smul.addr %s221, 8
        %s223 = scalar_lea.vmem %s0, %s222
        %p224 = pneg %p41
        %p225 = pneg %p38
        %p226 = pneg %p62
        %p227 = pneg %p59
        %p228 = pneg %p83
        %p229 = pneg %p80
        %p230 = pneg %p104
        %p231 = pneg %p101
        %p232 = pneg %p125
        %p233 = pneg %p122
        %p234 = pneg %p146
        %p235 = pneg %p143
        %p236 = pneg %p172
        %p237 = pneg %p169
        %s238 = sand.u32 %s159, 1
        %s239 = scalar_lea.sflag [#allocation6], %s238
        %s240 = sand.u32 %s159, 1
        %s241 = smul.addr %s240, 8
        %s242 = scalar_lea.vmem [#allocation5], %s241
        %p243 = scmp.lt.s32.totalorder %s20, 1
        %s244 = scalar_select %p243, %s20, 1
        %s245 = smul.addr %s244, 8
        %s246 = scalar_lea.vmem %s0, %s245
        %v248 = vld [vmem:[%s246] sm:$0xff]
        %v249 = vld [vmem:[%s5] sm:$0x1]
        %v250 = vld [vmem:[%s5 + $0x1] sm:$0x1]
        %v251 = vld [vmem:[%s5 + $0x2] sm:$0x1]
        %v252 = vld [vmem:[%s5 + $0x3] sm:$0x1]
        %v253 = vld [vmem:[%s5 + $0x4] sm:$0x1]
        %v254 = vld [vmem:[%s5 + $0x5] sm:$0x1]
        %vm255 = vcmask 261120
        %v256 = vsel %vm255, %v248, 0.0
        %257 = vadd.xlane.f32.xlu0 %v256
        %v258 = vpop.xlane.xlu0 %257
        %v259 = vrcp.pop 32.0
        %v260 = vmul.f32 %v258, %v259
        %v261 = vsub.f32 %v248, %v260
        %v262 = vmul.f32 %v261, %v261
        %v263 = vsel %vm255, %v262, 0.0
        %264 = vadd.xlane.f32.xlu0 %v263
        %v265 = vpop.xlane.xlu0 %264
        %v266 = vmul.f32 %v265, %v259
        %v267 = vadd.f32 %v266, 1e-05
        %v268 = vrsqrt.pop %v267
        %v269 = vmul.f32 %v261, %v268
        %v270 = vlaneseq
        %v271 = vshrl.u32 %v270, 7
        %v272 = vsub.s32 0, %v271
        %v273 = vrot.slane %v249, %v272
        %v274 = vmul.f32 %v269, %v273
        %v275 = vlaneseq
        %v276 = vshrl.u32 %v275, 7
        %v277 = vsub.s32 0, %v276
        %v278 = vrot.slane %v250, %v277
        %v279 = vadd.f32 %v274, %v278
        %v280 = vpack.c.bf16 %v279, %v279
        %v281 = vld [vmem:[%s1] sm:$0xf]
        %v282 = vld [vmem:[%s1 + $0x4] sm:$0xf]
        %v283 = vld [vmem:[%s1 + $0x8] sm:$0xf]
        %v284 = vld [vmem:[%s1 + $0xc] sm:$0xf]
        %v289 = vunpack.c.l.b16 %v281
        %v290 = vunpack.c.l.b16 %v282
        %v291 = vunpack.c.l.b16 %v283
        %v292 = vunpack.c.l.b16 %v284
        %v293 = vpack.c.b16 %v290, %v289
        %v294 = vpack.c.b16 %v292, %v291
        %v298 = vsel %vm255, %v280, 0
        %300 = vmatprep.subr.bf16.mxu0 0
        %301 = vmatpush1.bf16.msra.mxu0 %v293
        %302 = vmatprep.subr.bf16.mxu0 0
        %303 = vmatpush1.bf16.msra.mxu0 %v294
        %304 = vmatprep.subr.bf16.mxu0 0
        %305 = vmatpush1.bf16.msra.mxu0 0
        %306 = vmatprep.subr.bf16.mxu0 0
        %307 = vmatpush1.bf16.msra.mxu0 0
        %308 = vmatprep.subr.bf16.mxu0 0
        %309 = vmatpush1.bf16.msra.mxu0 0
        %310 = vmatprep.subr.bf16.mxu0 0
        %311 = vmatpush1.bf16.msra.mxu0 0
        %312 = vmatprep.subr.bf16.mxu0 0
        %313 = vmatpush1.bf16.msra.mxu0 0
        %314 = vmatprep.subr.bf16.mxu0 0
        %315 = vmatpush1.bf16.msra.mxu0 0
        %316 = vmatprep.subr.bf16.mxu0 0
        %317 = vmatpush1.bf16.msra.mxu0 0
        %318 = vmatprep.subr.bf16.mxu0 0
        %319 = vmatpush1.bf16.msra.mxu0 0
        %320 = vmatprep.subr.bf16.mxu0 0
        %321 = vmatpush1.bf16.msra.mxu0 0
        %322 = vmatprep.subr.bf16.mxu0 0
        %323 = vmatpush1.bf16.msra.mxu0 0
        %324 = vmatprep.subr.bf16.mxu0 0
        %325 = vmatpush1.bf16.msra.mxu0 0
        %326 = vmatprep.subr.bf16.mxu0 0
        %327 = vmatpush1.bf16.msra.mxu0 0
        %328 = vmatprep.subr.bf16.mxu0 0
        %329 = vmatpush1.bf16.msra.mxu0 0
        %330 = vmatprep.subr.bf16.mxu0 0
        %331 = vmatpush1.bf16.msra.mxu0 0
        %332 = vmatprep.mubr.bf16.mxu0 0
        %333 = vmatmul.mubr.bf16.gmra.mrb[0].mxu0 %v298
        %v334 = vpop.f32.mrb[0].mxu0
        %v335 = vadd.f32 0.0, %v334
        %v336 = vpop.f32.mrb[0].mxu0
        %v337 = vpop.f32.mrb[0].mxu0
        %v338 = vpop.f32.mrb[0].mxu0
        %339 = vdwg.mxu0
        %v340 = vmul.f32 %v335, 0.35355338
        %v341 = vpack.c.bf16 %v340, %v340
        %vm342 = vcmask 60416
        %343 = vst.msk [vmem:[#allocation2] sm:$0xf] %vm342, %v341
        %v344 = vpack.c.bf16 %v335, %v335
        %v346 = vunpack.c.l.b16 %v344
        %v347 = vpack.c.b16 %v346, %v346
        %348 = vrot.lane.b32.xlu0 %v347, 120
        %v349 = vpop.permute.xlu0 %348
        %351 = vst.msk [vmem:[#allocation3] sm:$0xf] %vm342, %v349
        %352 = vrot.lane.b32.xlu0 %v347, 112
        %v353 = vpop.permute.xlu0 %352
        %355 = vst.msk [vmem:[#allocation4] sm:$0xf] %vm342, %v353
        %v357 = vunpack.c.l.b16 %v341
        %v358 = vpack.c.b16 %v357, %v357
        %359 = vrot.lane.b32.xlu0 %v358, 104
        %v360 = vpop.permute.xlu0 %359
        %s362 = scalar_lea.vmem [#allocation2], 4
        %363 = vst.msk [vmem:[%s362] sm:$0xf] %vm342, %v360
        %364 = vrot.lane.b32.xlu0 %v347, 96
        %v365 = vpop.permute.xlu0 %364
        %s367 = scalar_lea.vmem [#allocation3], 4
        %368 = vst.msk [vmem:[%s367] sm:$0xf] %vm342, %v365
        %369 = vrot.lane.b32.xlu0 %v347, 88
        %v370 = vpop.permute.xlu0 %369
        %s372 = scalar_lea.vmem [#allocation4], 4
        %373 = vst.msk [vmem:[%s372] sm:$0xf] %vm342, %v370
        %374 = vrot.lane.b32.xlu0 %v358, 80
        %v375 = vpop.permute.xlu0 %374
        %s377 = scalar_lea.vmem [#allocation2], 8
        %378 = vst.msk [vmem:[%s377] sm:$0xf] %vm342, %v375
        %379 = vrot.lane.b32.xlu0 %v347, 72
        %v380 = vpop.permute.xlu0 %379
        %s382 = scalar_lea.vmem [#allocation3], 8
        %383 = vst.msk [vmem:[%s382] sm:$0xf] %vm342, %v380
        %384 = vrot.lane.b32.xlu0 %v347, 64
        %v385 = vpop.permute.xlu0 %384
        %s387 = scalar_lea.vmem [#allocation4], 8
        %388 = vst.msk [vmem:[%s387] sm:$0xf] %vm342, %v385
        %389 = vrot.lane.b32.xlu0 %v358, 56
        %v390 = vpop.permute.xlu0 %389
        %s392 = scalar_lea.vmem [#allocation2], 12
        %393 = vst.msk [vmem:[%s392] sm:$0xf] %vm342, %v390
        %394 = vrot.lane.b32.xlu0 %v347, 48
        %v395 = vpop.permute.xlu0 %394
        %s397 = scalar_lea.vmem [#allocation3], 12
        %398 = vst.msk [vmem:[%s397] sm:$0xf] %vm342, %v395
        %399 = vrot.lane.b32.xlu0 %v347, 40
        %v400 = vpop.permute.xlu0 %399
        %s402 = scalar_lea.vmem [#allocation4], 12
        %403 = vst.msk [vmem:[%s402] sm:$0xf] %vm342, %v400
        %v404 = vld [vmem:[#allocation2] sm:$0xf]
        %v405 = vld [vmem:[#allocation2 + $0x4] sm:$0xf]
        %v406 = vld [vmem:[#allocation2 + $0x8] sm:$0xf]
        %v407 = vld [vmem:[#allocation2 + $0xc] sm:$0xf]
        %v408 = vld [vmem:[#allocation3] sm:$0xf]
        %v409 = vld [vmem:[#allocation3 + $0x4] sm:$0xf]
        %v410 = vld [vmem:[#allocation3 + $0x8] sm:$0xf]
        %v411 = vld [vmem:[#allocation3 + $0xc] sm:$0xf]
        %v412 = vld [vmem:[#allocation4] sm:$0xf]
        %v413 = vld [vmem:[#allocation4 + $0x4] sm:$0xf]
        %v414 = vld [vmem:[#allocation4 + $0x8] sm:$0xf]
        %v415 = vld [vmem:[#allocation4 + $0xc] sm:$0xf]
        %v416 = vlaneseq
        %v417 = vshrl.u32 %v416, 7
        %v418 = vlaneseq
        %v419 = vand.u32 %v418, 127
        %vm420 = vcmp.le.s32.totalorder %v419, %v417
        %v421 = vsel %vm420, 0.0, -1e+30
        %vm422 = vcmask 64512
        %v424 = vsel %vm422, %v404, 0
        %v427 = vsel %vm422, %v408, 0
        %429 = vmatprep.subr.bf16.mxu0 0
        %430 = vmatpush1.bf16.xpose.msra.mxu0 %v427
        %431 = vmatprep.subr.bf16.mxu0 0
        %432 = vmatpush1.bf16.xpose.msra.mxu0 0
        %433 = vmatprep.subr.bf16.mxu0 0
        %434 = vmatpush1.bf16.xpose.msra.mxu0 0
        %435 = vmatprep.subr.bf16.mxu0 0
        %436 = vmatpush1.bf16.xpose.msra.mxu0 0
        %437 = vmatprep.subr.bf16.mxu0 0
        %438 = vmatpush1.bf16.xpose.msra.mxu0 0
        %439 = vmatprep.subr.bf16.mxu0 0
        %440 = vmatpush1.bf16.xpose.msra.mxu0 0
        %441 = vmatprep.subr.bf16.mxu0 0
        %442 = vmatpush1.bf16.xpose.msra.mxu0 0
        %443 = vmatprep.subr.bf16.mxu0 0
        %444 = vmatpush1.bf16.xpose.msra.mxu0 0
        %445 = vmatprep.subr.bf16.mxu0 0
        %446 = vmatpush1.bf16.xpose.msra.mxu0 0
        %447 = vmatprep.subr.bf16.mxu0 0
        %448 = vmatpush1.bf16.xpose.msra.mxu0 0
        %449 = vmatprep.subr.bf16.mxu0 0
        %450 = vmatpush1.bf16.xpose.msra.mxu0 0
        %451 = vmatprep.subr.bf16.mxu0 0
        %452 = vmatpush1.bf16.xpose.msra.mxu0 0
        %453 = vmatprep.subr.bf16.mxu0 0
        %454 = vmatpush1.bf16.xpose.msra.mxu0 0
        %455 = vmatprep.subr.bf16.mxu0 0
        %456 = vmatpush1.bf16.xpose.msra.mxu0 0
        %457 = vmatprep.subr.bf16.mxu0 0
        %458 = vmatpush1.bf16.xpose.msra.mxu0 0
        %459 = vmatprep.subr.bf16.mxu0 0
        %460 = vmatpush1.bf16.xpose.msra.mxu0 0
        %461 = vmatprep.mubr.bf16.mxu0 0
        %462 = vmatmul.mubr.bf16.gmra.mrb[0].mxu0 %v424
        %v463 = vpop.f32.mrb[0].mxu0
        %v464 = vadd.f32 %v421, %v463
        %v465 = vpop.f32.mrb[0].mxu0
        %v466 = vpop.f32.mrb[0].mxu0
        %v467 = vpop.f32.mrb[0].mxu0
        %468 = vdwg.mxu0
        %v470 = vsel %vm422, %v405, 0
        %v473 = vsel %vm422, %v409, 0
        %475 = vmatprep.subr.bf16.mxu0 0
        %476 = vmatpush1.bf16.xpose.msra.mxu0 %v473
        %477 = vmatprep.subr.bf16.mxu0 0
        %478 = vmatpush1.bf16.xpose.msra.mxu0 0
        %479 = vmatprep.subr.bf16.mxu0 0
        %480 = vmatpush1.bf16.xpose.msra.mxu0 0
        %481 = vmatprep.subr.bf16.mxu0 0
        %482 = vmatpush1.bf16.xpose.msra.mxu0 0
        %483 = vmatprep.subr.bf16.mxu0 0
        %484 = vmatpush1.bf16.xpose.msra.mxu0 0
        %485 = vmatprep.subr.bf16.mxu0 0
        %486 = vmatpush1.bf16.xpose.msra.mxu0 0
        %487 = vmatprep.subr.bf16.mxu0 0
        %488 = vmatpush1.bf16.xpose.msra.mxu0 0
        %489 = vmatprep.subr.bf16.mxu0 0
        %490 = vmatpush1.bf16.xpose.msra.mxu0 0
        %491 = vmatprep.subr.bf16.mxu0 0
        %492 = vmatpush1.bf16.xpose.msra.mxu0 0
        %493 = vmatprep.subr.bf16.mxu0 0
        %494 = vmatpush1.bf16.xpose.msra.mxu0 0
        %495 = vmatprep.subr.bf16.mxu0 0
        %496 = vmatpush1.bf16.xpose.msra.mxu0 0
        %497 = vmatprep.subr.bf16.mxu0 0
        %498 = vmatpush1.bf16.xpose.msra.mxu0 0
        %499 = vmatprep.subr.bf16.mxu0 0
        %500 = vmatpush1.bf16.xpose.msra.mxu0 0
        %501 = vmatprep.subr.bf16.mxu0 0
        %502 = vmatpush1.bf16.xpose.msra.mxu0 0
        %503 = vmatprep.subr.bf16.mxu0 0
        %504 = vmatpush1.bf16.xpose.msra.mxu0 0
        %505 = vmatprep.subr.bf16.mxu0 0
        %506 = vmatpush1.bf16.xpose.msra.mxu0 0
        %507 = vmatprep.mubr.bf16.mxu0 0
        %508 = vmatmul.mubr.bf16.gmra.mrb[0].mxu0 %v470
        %v509 = vpop.f32.mrb[0].mxu0
        %v510 = vadd.f32 %v421, %v509
        %v511 = vpop.f32.mrb[0].mxu0
        %v512 = vpop.f32.mrb[0].mxu0
        %v513 = vpop.f32.mrb[0].mxu0
        %514 = vdwg.mxu0
        %v516 = vsel %vm422, %v406, 0
        %v519 = vsel %vm422, %v410, 0
        %521 = vmatprep.subr.bf16.mxu0 0
        %522 = vmatpush1.bf16.xpose.msra.mxu0 %v519
        %523 = vmatprep.subr.bf16.mxu0 0
        %524 = vmatpush1.bf16.xpose.msra.mxu0 0
        %525 = vmatprep.subr.bf16.mxu0 0
        %526 = vmatpush1.bf16.xpose.msra.mxu0 0
        %527 = vmatprep.subr.bf16.mxu0 0
        %528 = vmatpush1.bf16.xpose.msra.mxu0 0
        %529 = vmatprep.subr.bf16.mxu0 0
        %530 = vmatpush1.bf16.xpose.msra.mxu0 0
        %531 = vmatprep.subr.bf16.mxu0 0
        %532 = vmatpush1.bf16.xpose.msra.mxu0 0
        %533 = vmatprep.subr.bf16.mxu0 0
        %534 = vmatpush1.bf16.xpose.msra.mxu0 0
        %535 = vmatprep.subr.bf16.mxu0 0
        %536 = vmatpush1.bf16.xpose.msra.mxu0 0
        %537 = vmatprep.subr.bf16.mxu0 0
        %538 = vmatpush1.bf16.xpose.msra.mxu0 0
        %539 = vmatprep.subr.bf16.mxu0 0
        %540 = vmatpush1.bf16.xpose.msra.mxu0 0
        %541 = vmatprep.subr.bf16.mxu0 0
        %542 = vmatpush1.bf16.xpose.msra.mxu0 0
        %543 = vmatprep.subr.bf16.mxu0 0
        %544 = vmatpush1.bf16.xpose.msra.mxu0 0
        %545 = vmatprep.subr.bf16.mxu0 0
        %546 = vmatpush1.bf16.xpose.msra.mxu0 0
        %547 = vmatprep.subr.bf16.mxu0 0
        %548 = vmatpush1.bf16.xpose.msra.mxu0 0
        %549 = vmatprep.subr.bf16.mxu0 0
        %550 = vmatpush1.bf16.xpose.msra.mxu0 0
        %551 = vmatprep.subr.bf16.mxu0 0
        %552 = vmatpush1.bf16.xpose.msra.mxu0 0
        %553 = vmatprep.mubr.bf16.mxu0 0
        %554 = vmatmul.mubr.bf16.gmra.mrb[0].mxu0 %v516
        %v555 = vpop.f32.mrb[0].mxu0
        %v556 = vadd.f32 %v421, %v555
        %v557 = vpop.f32.mrb[0].mxu0
        %v558 = vpop.f32.mrb[0].mxu0
        %v559 = vpop.f32.mrb[0].mxu0
        %560 = vdwg.mxu0
        %v562 = vsel %vm422, %v407, 0
        %v565 = vsel %vm422, %v411, 0
        %567 = vmatprep.subr.bf16.mxu0 0
        %568 = vmatpush1.bf16.xpose.msra.mxu0 %v565
        %569 = vmatprep.subr.bf16.mxu0 0
        %570 = vmatpush1.bf16.xpose.msra.mxu0 0
        %571 = vmatprep.subr.bf16.mxu0 0
        %572 = vmatpush1.bf16.xpose.msra.mxu0 0
        %573 = vmatprep.subr.bf16.mxu0 0
        %574 = vmatpush1.bf16.xpose.msra.mxu0 0
        %575 = vmatprep.subr.bf16.mxu0 0
        %576 = vmatpush1.bf16.xpose.msra.mxu0 0
        %577 = vmatprep.subr.bf16.mxu0 0
        %578 = vmatpush1.bf16.xpose.msra.mxu0 0
        %579 = vmatprep.subr.bf16.mxu0 0
        %580 = vmatpush1.bf16.xpose.msra.mxu0 0
        %581 = vmatprep.subr.bf16.mxu0 0
        %582 = vmatpush1.bf16.xpose.msra.mxu0 0
        %583 = vmatprep.subr.bf16.mxu0 0
        %584 = vmatpush1.bf16.xpose.msra.mxu0 0
        %585 = vmatprep.subr.bf16.mxu0 0
        %586 = vmatpush1.bf16.xpose.msra.mxu0 0
        %587 = vmatprep.subr.bf16.mxu0 0
        %588 = vmatpush1.bf16.xpose.msra.mxu0 0
        %589 = vmatprep.subr.bf16.mxu0 0
        %590 = vmatpush1.bf16.xpose.msra.mxu0 0
        %591 = vmatprep.subr.bf16.mxu0 0
        %592 = vmatpush1.bf16.xpose.msra.mxu0 0
        %593 = vmatprep.subr.bf16.mxu0 0
        %594 = vmatpush1.bf16.xpose.msra.mxu0 0
        %595 = vmatprep.subr.bf16.mxu0 0
        %596 = vmatpush1.bf16.xpose.msra.mxu0 0
        %597 = vmatprep.subr.bf16.mxu0 0
        %598 = vmatpush1.bf16.xpose.msra.mxu0 0
        %599 = vmatprep.mubr.bf16.mxu0 0
        %600 = vmatmul.mubr.bf16.gmra.mrb[0].mxu0 %v562
        %v601 = vpop.f32.mrb[0].mxu0
        %v602 = vadd.f32 %v421, %v601
        %v603 = vpop.f32.mrb[0].mxu0
        %v604 = vpop.f32.mrb[0].mxu0
        %v605 = vpop.f32.mrb[0].mxu0
        %606 = vdwg.mxu0
        %v607 = vsel %vm422, %v464, -inf
        %608 = vmax.xlane.f32.xlu0 %v607
        %v609 = vpop.xlane.xlu0 %608
        %v610 = vsel %vm422, %v510, -inf
        %611 = vmax.xlane.f32.xlu0 %v610
        %v612 = vpop.xlane.xlu0 %611
        %v613 = vsel %vm422, %v556, -inf
        %614 = vmax.xlane.f32.xlu0 %v613
        %v615 = vpop.xlane.xlu0 %614
        %v616 = vsel %vm422, %v602, -inf
        %617 = vmax.xlane.f32.xlu0 %v616
        %v618 = vpop.xlane.xlu0 %617
        %v619 = vsub.f32 %v464, %v609
        %v620 = vsub.f32 %v510, %v612
        %v621 = vsub.f32 %v556, %v615
        %v622 = vsub.f32 %v602, %v618
        %v623 = vmul.f32 %v619, 1.442695
        %v624 = vpow.pop %v623
        %v625 = vmul.f32 %v620, 1.442695
        %v626 = vpow.pop %v625
        %v627 = vmul.f32 %v621, 1.442695
        %v628 = vpow.pop %v627
        %v629 = vmul.f32 %v622, 1.442695
        %v630 = vpow.pop %v629
        %v631 = vsel %vm422, %v624, 0.0
        %632 = vadd.xlane.f32.xlu0 %v631
        %v633 = vpop.xlane.xlu0 %632
        %v634 = vsel %vm422, %v626, 0.0
        %635 = vadd.xlane.f32.xlu0 %v634
        %v636 = vpop.xlane.xlu0 %635
        %v637 = vsel %vm422, %v628, 0.0
        %638 = vadd.xlane.f32.xlu0 %v637
        %v639 = vpop.xlane.xlu0 %638
        %v640 = vsel %vm422, %v630, 0.0
        %641 = vadd.xlane.f32.xlu0 %v640
        %v642 = vpop.xlane.xlu0 %641
        %v643 = vrcp.pop %v633
        %v644 = vrcp.pop %v636
        %v645 = vrcp.pop %v639
        %v646 = vrcp.pop %v642
        %v647 = vmul.f32 %v624, %v643
        %v648 = vmul.f32 %v626, %v644
        %v649 = vmul.f32 %v628, %v645
        %v650 = vmul.f32 %v630, %v646
        %v651 = vpack.c.bf16 %v647, %v647
        %v652 = vpack.c.bf16 %v648, %v648
        %v653 = vpack.c.bf16 %v649, %v649
        %v654 = vpack.c.bf16 %v650, %v650
        %v656 = vsel %vm422, %v651, 0
        %vm658 = vcmask 1043456
        %v660 = vsel %vm658, %v412, 0
        %662 = vmatprep.subr.bf16.mxu0 0
        %663 = vmatpush1.bf16.msra.mxu0 %v660
        %664 = vmatprep.subr.bf16.mxu0 0
        %665 = vmatpush1.bf16.msra.mxu0 0
        %666 = vmatprep.subr.bf16.mxu0 0
        %667 = vmatpush1.bf16.msra.mxu0 0
        %668 = vmatprep.subr.bf16.mxu0 0
        %669 = vmatpush1.bf16.msra.mxu0 0
        %670 = vmatprep.subr.bf16.mxu0 0
        %671 = vmatpush1.bf16.msra.mxu0 0
        %672 = vmatprep.subr.bf16.mxu0 0
        %673 = vmatpush1.bf16.msra.mxu0 0
        %674 = vmatprep.subr.bf16.mxu0 0
        %675 = vmatpush1.bf16.msra.mxu0 0
        %676 = vmatprep.subr.bf16.mxu0 0
        %677 = vmatpush1.bf16.msra.mxu0 0
        %678 = vmatprep.subr.bf16.mxu0 0
        %679 = vmatpush1.bf16.msra.mxu0 0
        %680 = vmatprep.subr.bf16.mxu0 0
        %681 = vmatpush1.bf16.msra.mxu0 0
        %682 = vmatprep.subr.bf16.mxu0 0
        %683 = vmatpush1.bf16.msra.mxu0 0
        %684 = vmatprep.subr.bf16.mxu0 0
        %685 = vmatpush1.bf16.msra.mxu0 0
        %686 = vmatprep.subr.bf16.mxu0 0
        %687 = vmatpush1.bf16.msra.mxu0 0
        %688 = vmatprep.subr.bf16.mxu0 0
        %689 = vmatpush1.bf16.msra.mxu0 0
        %690 = vmatprep.subr.bf16.mxu0 0
        %691 = vmatpush1.bf16.msra.mxu0 0
        %692 = vmatprep.subr.bf16.mxu0 0
        %693 = vmatpush1.bf16.msra.mxu0 0
        %694 = vmatprep.mubr.bf16.mxu0 0
        %695 = vmatmul.mubr.bf16.gmra.mrb[0].mxu0 %v656
        %v696 = vpop.f32.mrb[0].mxu0
        %v697 = vadd.f32 0.0, %v696
        %v698 = vpop.f32.mrb[0].mxu0
        %v699 = vpop.f32.mrb[0].mxu0
        %v700 = vpop.f32.mrb[0].mxu0
        %701 = vdwg.mxu0
        %v703 = vsel %vm422, %v652, 0
        %v706 = vsel %vm658, %v413, 0
        %708 = vmatprep.subr.bf16.mxu0 0
        %709 = vmatpush1.bf16.msra.mxu0 %v706
        %710 = vmatprep.subr.bf16.mxu0 0
        %711 = vmatpush1.bf16.msra.mxu0 0
        %712 = vmatprep.subr.bf16.mxu0 0
        %713 = vmatpush1.bf16.msra.mxu0 0
        %714 = vmatprep.subr.bf16.mxu0 0
        %715 = vmatpush1.bf16.msra.mxu0 0
        %716 = vmatprep.subr.bf16.mxu0 0
        %717 = vmatpush1.bf16.msra.mxu0 0
        %718 = vmatprep.subr.bf16.mxu0 0
        %719 = vmatpush1.bf16.msra.mxu0 0
        %720 = vmatprep.subr.bf16.mxu0 0
        %721 = vmatpush1.bf16.msra.mxu0 0
        %722 = vmatprep.subr.bf16.mxu0 0
        %723 = vmatpush1.bf16.msra.mxu0 0
        %724 = vmatprep.subr.bf16.mxu0 0
        %725 = vmatpush1.bf16.msra.mxu0 0
        %726 = vmatprep.subr.bf16.mxu0 0
        %727 = vmatpush1.bf16.msra.mxu0 0
        %728 = vmatprep.subr.bf16.mxu0 0
        %729 = vmatpush1.bf16.msra.mxu0 0
        %730 = vmatprep.subr.bf16.mxu0 0
        %731 = vmatpush1.bf16.msra.mxu0 0
        %732 = vmatprep.subr.bf16.mxu0 0
        %733 = vmatpush1.bf16.msra.mxu0 0
        %734 = vmatprep.subr.bf16.mxu0 0
        %735 = vmatpush1.bf16.msra.mxu0 0
        %736 = vmatprep.subr.bf16.mxu0 0
        %737 = vmatpush1.bf16.msra.mxu0 0
        %738 = vmatprep.subr.bf16.mxu0 0
        %739 = vmatpush1.bf16.msra.mxu0 0
        %740 = vmatprep.mubr.bf16.mxu0 0
        %741 = vmatmul.mubr.bf16.gmra.mrb[0].mxu0 %v703
        %v742 = vpop.f32.mrb[0].mxu0
        %v743 = vadd.f32 0.0, %v742
        %v744 = vpop.f32.mrb[0].mxu0
        %v745 = vpop.f32.mrb[0].mxu0
        %v746 = vpop.f32.mrb[0].mxu0
        %747 = vdwg.mxu0
        %v749 = vsel %vm422, %v653, 0
        %v752 = vsel %vm658, %v414, 0
        %754 = vmatprep.subr.bf16.mxu0 0
        %755 = vmatpush1.bf16.msra.mxu0 %v752
        %756 = vmatprep.subr.bf16.mxu0 0
        %757 = vmatpush1.bf16.msra.mxu0 0
        %758 = vmatprep.subr.bf16.mxu0 0
        %759 = vmatpush1.bf16.msra.mxu0 0
        %760 = vmatprep.subr.bf16.mxu0 0
        %761 = vmatpush1.bf16.msra.mxu0 0
        %762 = vmatprep.subr.bf16.mxu0 0
        %763 = vmatpush1.bf16.msra.mxu0 0
        %764 = vmatprep.subr.bf16.mxu0 0
        %765 = vmatpush1.bf16.msra.mxu0 0
        %766 = vmatprep.subr.bf16.mxu0 0
        %767 = vmatpush1.bf16.msra.mxu0 0
        %768 = vmatprep.subr.bf16.mxu0 0
        %769 = vmatpush1.bf16.msra.mxu0 0
        %770 = vmatprep.subr.bf16.mxu0 0
        %771 = vmatpush1.bf16.msra.mxu0 0
        %772 = vmatprep.subr.bf16.mxu0 0
        %773 = vmatpush1.bf16.msra.mxu0 0
        %774 = vmatprep.subr.bf16.mxu0 0
        %775 = vmatpush1.bf16.msra.mxu0 0
        %776 = vmatprep.subr.bf16.mxu0 0
        %777 = vmatpush1.bf16.msra.mxu0 0
        %778 = vmatprep.subr.bf16.mxu0 0
        %779 = vmatpush1.bf16.msra.mxu0 0
        %780 = vmatprep.subr.bf16.mxu0 0
        %781 = vmatpush1.bf16.msra.mxu0 0
        %782 = vmatprep.subr.bf16.mxu0 0
        %783 = vmatpush1.bf16.msra.mxu0 0
        %784 = vmatprep.subr.bf16.mxu0 0
        %785 = vmatpush1.bf16.msra.mxu0 0
        %786 = vmatprep.mubr.bf16.mxu0 0
        %787 = vmatmul.mubr.bf16.gmra.mrb[0].mxu0 %v749
        %v788 = vpop.f32.mrb[0].mxu0
        %v789 = vadd.f32 0.0, %v788
        %v790 = vpop.f32.mrb[0].mxu0
        %v791 = vpop.f32.mrb[0].mxu0
        %v792 = vpop.f32.mrb[0].mxu0
        %793 = vdwg.mxu0
        %v795 = vsel %vm422, %v654, 0
        %v798 = vsel %vm658, %v415, 0
        %800 = vmatprep.subr.bf16.mxu0 0
        %801 = vmatpush1.bf16.msra.mxu0 %v798
        %802 = vmatprep.subr.bf16.mxu0 0
        %803 = vmatpush1.bf16.msra.mxu0 0
        %804 = vmatprep.subr.bf16.mxu0 0
        %805 = vmatpush1.bf16.msra.mxu0 0
        %806 = vmatprep.subr.bf16.mxu0 0
        %807 = vmatpush1.bf16.msra.mxu0 0
        %808 = vmatprep.subr.bf16.mxu0 0
        %809 = vmatpush1.bf16.msra.mxu0 0
        %810 = vmatprep.subr.bf16.mxu0 0
        %811 = vmatpush1.bf16.msra.mxu0 0
        %812 = vmatprep.subr.bf16.mxu0 0
        %813 = vmatpush1.bf16.msra.mxu0 0
        %814 = vmatprep.subr.bf16.mxu0 0
        %815 = vmatpush1.bf16.msra.mxu0 0
        %816 = vmatprep.subr.bf16.mxu0 0
        %817 = vmatpush1.bf16.msra.mxu0 0
        %818 = vmatprep.subr.bf16.mxu0 0
        %819 = vmatpush1.bf16.msra.mxu0 0
        %820 = vmatprep.subr.bf16.mxu0 0
        %821 = vmatpush1.bf16.msra.mxu0 0
        %822 = vmatprep.subr.bf16.mxu0 0
        %823 = vmatpush1.bf16.msra.mxu0 0
        %824 = vmatprep.subr.bf16.mxu0 0
        %825 = vmatpush1.bf16.msra.mxu0 0
        %826 = vmatprep.subr.bf16.mxu0 0
        %827 = vmatpush1.bf16.msra.mxu0 0
        %828 = vmatprep.subr.bf16.mxu0 0
        %829 = vmatpush1.bf16.msra.mxu0 0
        %830 = vmatprep.subr.bf16.mxu0 0
        %831 = vmatpush1.bf16.msra.mxu0 0
        %832 = vmatprep.mubr.bf16.mxu0 0
        %833 = vmatmul.mubr.bf16.gmra.mrb[0].mxu0 %v795
        %v834 = vpop.f32.mrb[0].mxu0
        %v835 = vadd.f32 0.0, %v834
        %v836 = vpop.f32.mrb[0].mxu0
        %v837 = vpop.f32.mrb[0].mxu0
        %v838 = vpop.f32.mrb[0].mxu0
        %839 = vdwg.mxu0
        %v840 = vpack.c.bf16 %v697, %v697
        %v841 = vpack.c.bf16 %v743, %v743
        %v842 = vpack.c.bf16 %v789, %v789
        %v843 = vpack.c.bf16 %v835, %v835
        %v844 = vld [vmem:[%s2] sm:$0xf]
        %s845 = scalar_lea.vmem %s2, 4
        %v846 = vld [vmem:[%s845] sm:$0xf]
        %v848 = vsel %vm422, %v841, 0
        %v851 = vsel %vm658, %v846, 0
        %853 = vmatprep.subr.bf16.mxu0 0
        %854 = vmatpush1.bf16.msra.mxu0 %v851
        %855 = vmatprep.subr.bf16.mxu0 0
        %856 = vmatpush1.bf16.msra.mxu0 0
        %857 = vmatprep.subr.bf16.mxu0 0
        %858 = vmatpush1.bf16.msra.mxu0 0
        %859 = vmatprep.subr.bf16.mxu0 0
        %860 = vmatpush1.bf16.msra.mxu0 0
        %861 = vmatprep.subr.bf16.mxu0 0
        %862 = vmatpush1.bf16.msra.mxu0 0
        %863 = vmatprep.subr.bf16.mxu0 0
        %864 = vmatpush1.bf16.msra.mxu0 0
        %865 = vmatprep.subr.bf16.mxu0 0
        %866 = vmatpush1.bf16.msra.mxu0 0
        %867 = vmatprep.subr.bf16.mxu0 0
        %868 = vmatpush1.bf16.msra.mxu0 0
        %869 = vmatprep.subr.bf16.mxu0 0
        %870 = vmatpush1.bf16.msra.mxu0 0
        %871 = vmatprep.subr.bf16.mxu0 0
        %872 = vmatpush1.bf16.msra.mxu0 0
        %873 = vmatprep.subr.bf16.mxu0 0
        %874 = vmatpush1.bf16.msra.mxu0 0
        %875 = vmatprep.subr.bf16.mxu0 0
        %876 = vmatpush1.bf16.msra.mxu0 0
        %877 = vmatprep.subr.bf16.mxu0 0
        %878 = vmatpush1.bf16.msra.mxu0 0
        %879 = vmatprep.subr.bf16.mxu0 0
        %880 = vmatpush1.bf16.msra.mxu0 0
        %881 = vmatprep.subr.bf16.mxu0 0
        %882 = vmatpush1.bf16.msra.mxu0 0
        %883 = vmatprep.subr.bf16.mxu0 0
        %884 = vmatpush1.bf16.msra.mxu0 0
        %885 = vmatprep.mubr.bf16.mxu0 0
        %886 = vmatmul.mubr.bf16.gmra.mrb[0].mxu0 %v848
        %v887 = vpop.f32.mrb[0].mxu0
        %v888 = vadd.f32 0.0, %v887
        %v889 = vpop.f32.mrb[0].mxu0
        %v890 = vpop.f32.mrb[0].mxu0
        %v891 = vpop.f32.mrb[0].mxu0
        %892 = vdwg.mxu0
        %v894 = vsel %vm422, %v840, 0
        %v897 = vsel %vm658, %v844, 0
        %899 = vmatprep.subr.bf16.mxu0 0
        %900 = vmatpush1.bf16.msra.mxu0 %v897
        %901 = vmatprep.subr.bf16.mxu0 0
        %902 = vmatpush1.bf16.msra.mxu0 0
        %903 = vmatprep.subr.bf16.mxu0 0
        %904 = vmatpush1.bf16.msra.mxu0 0
        %905 = vmatprep.subr.bf16.mxu0 0
        %906 = vmatpush1.bf16.msra.mxu0 0
        %907 = vmatprep.subr.bf16.mxu0 0
        %908 = vmatpush1.bf16.msra.mxu0 0
        %909 = vmatprep.subr.bf16.mxu0 0
        %910 = vmatpush1.bf16.msra.mxu0 0
        %911 = vmatprep.subr.bf16.mxu0 0
        %912 = vmatpush1.bf16.msra.mxu0 0
        %913 = vmatprep.subr.bf16.mxu0 0
        %914 = vmatpush1.bf16.msra.mxu0 0
        %915 = vmatprep.subr.bf16.mxu0 0
        %916 = vmatpush1.bf16.msra.mxu0 0
        %917 = vmatprep.subr.bf16.mxu0 0
        %918 = vmatpush1.bf16.msra.mxu0 0
        %919 = vmatprep.subr.bf16.mxu0 0
        %920 = vmatpush1.bf16.msra.mxu0 0
        %921 = vmatprep.subr.bf16.mxu0 0
        %922 = vmatpush1.bf16.msra.mxu0 0
        %923 = vmatprep.subr.bf16.mxu0 0
        %924 = vmatpush1.bf16.msra.mxu0 0
        %925 = vmatprep.subr.bf16.mxu0 0
        %926 = vmatpush1.bf16.msra.mxu0 0
        %927 = vmatprep.subr.bf16.mxu0 0
        %928 = vmatpush1.bf16.msra.mxu0 0
        %929 = vmatprep.subr.bf16.mxu0 0
        %930 = vmatpush1.bf16.msra.mxu0 0
        %931 = vmatprep.mubr.bf16.mxu0 0
        %932 = vmatmul.mubr.bf16.gmra.mrb[0].mxu0 %v894
        %v933 = vpop.f32.mrb[0].mxu0
        %v934 = vadd.f32 %v888, %v933
        %v935 = vpop.f32.mrb[0].mxu0
        %v936 = vpop.f32.mrb[0].mxu0
        %v937 = vpop.f32.mrb[0].mxu0
        %938 = vdwg.mxu0
        %s939 = scalar_lea.vmem %s2, 8
        %v940 = vld [vmem:[%s939] sm:$0xf]
        %v942 = vsel %vm422, %v842, 0
        %v945 = vsel %vm658, %v940, 0
        %947 = vmatprep.subr.bf16.mxu0 0
        %948 = vmatpush1.bf16.msra.mxu0 %v945
        %949 = vmatprep.subr.bf16.mxu0 0
        %950 = vmatpush1.bf16.msra.mxu0 0
        %951 = vmatprep.subr.bf16.mxu0 0
        %952 = vmatpush1.bf16.msra.mxu0 0
        %953 = vmatprep.subr.bf16.mxu0 0
        %954 = vmatpush1.bf16.msra.mxu0 0
        %955 = vmatprep.subr.bf16.mxu0 0
        %956 = vmatpush1.bf16.msra.mxu0 0
        %957 = vmatprep.subr.bf16.mxu0 0
        %958 = vmatpush1.bf16.msra.mxu0 0
        %959 = vmatprep.subr.bf16.mxu0 0
        %960 = vmatpush1.bf16.msra.mxu0 0
        %961 = vmatprep.subr.bf16.mxu0 0
        %962 = vmatpush1.bf16.msra.mxu0 0
        %963 = vmatprep.subr.bf16.mxu0 0
        %964 = vmatpush1.bf16.msra.mxu0 0
        %965 = vmatprep.subr.bf16.mxu0 0
        %966 = vmatpush1.bf16.msra.mxu0 0
        %967 = vmatprep.subr.bf16.mxu0 0
        %968 = vmatpush1.bf16.msra.mxu0 0
        %969 = vmatprep.subr.bf16.mxu0 0
        %970 = vmatpush1.bf16.msra.mxu0 0
        %971 = vmatprep.subr.bf16.mxu0 0
        %972 = vmatpush1.bf16.msra.mxu0 0
        %973 = vmatprep.subr.bf16.mxu0 0
        %974 = vmatpush1.bf16.msra.mxu0 0
        %975 = vmatprep.subr.bf16.mxu0 0
        %976 = vmatpush1.bf16.msra.mxu0 0
        %977 = vmatprep.subr.bf16.mxu0 0
        %978 = vmatpush1.bf16.msra.mxu0 0
        %979 = vmatprep.mubr.bf16.mxu0 0
        %980 = vmatmul.mubr.bf16.gmra.mrb[0].mxu0 %v942
        %v981 = vpop.f32.mrb[0].mxu0
        %v982 = vadd.f32 0.0, %v981
        %v983 = vpop.f32.mrb[0].mxu0
        %v984 = vpop.f32.mrb[0].mxu0
        %v985 = vpop.f32.mrb[0].mxu0
        %986 = vdwg.mxu0
        %v987 = vadd.f32 %v934, %v982
        %s988 = scalar_lea.vmem %s2, 12
        %v989 = vld [vmem:[%s988] sm:$0xf]
        %v991 = vsel %vm422, %v843, 0
        %v994 = vsel %vm658, %v989, 0
        %996 = vmatprep.subr.bf16.mxu0 0
        %997 = vmatpush1.bf16.msra.mxu0 %v994
        %998 = vmatprep.subr.bf16.mxu0 0
        %999 = vmatpush1.bf16.msra.mxu0 0
        %1000 = vmatprep.subr.bf16.mxu0 0
        %1001 = vmatpush1.bf16.msra.mxu0 0
        %1002 = vmatprep.subr.bf16.mxu0 0
        %1003 = vmatpush1.bf16.msra.mxu0 0
        %1004 = vmatprep.subr.bf16.mxu0 0
        %1005 = vmatpush1.bf16.msra.mxu0 0
        %1006 = vmatprep.subr.bf16.mxu0 0
        %1007 = vmatpush1.bf16.msra.mxu0 0
        %1008 = vmatprep.subr.bf16.mxu0 0
        %1009 = vmatpush1.bf16.msra.mxu0 0
        %1010 = vmatprep.subr.bf16.mxu0 0
        %1011 = vmatpush1.bf16.msra.mxu0 0
        %1012 = vmatprep.subr.bf16.mxu0 0
        %1013 = vmatpush1.bf16.msra.mxu0 0
        %1014 = vmatprep.subr.bf16.mxu0 0
        %1015 = vmatpush1.bf16.msra.mxu0 0
        %1016 = vmatprep.subr.bf16.mxu0 0
        %1017 = vmatpush1.bf16.msra.mxu0 0
        %1018 = vmatprep.subr.bf16.mxu0 0
        %1019 = vmatpush1.bf16.msra.mxu0 0
        %1020 = vmatprep.subr.bf16.mxu0 0
        %1021 = vmatpush1.bf16.msra.mxu0 0
        %1022 = vmatprep.subr.bf16.mxu0 0
        %1023 = vmatpush1.bf16.msra.mxu0 0
        %1024 = vmatprep.subr.bf16.mxu0 0
        %1025 = vmatpush1.bf16.msra.mxu0 0
        %1026 = vmatprep.subr.bf16.mxu0 0
        %1027 = vmatpush1.bf16.msra.mxu0 0
        %1028 = vmatprep.mubr.bf16.mxu0 0
        %1029 = vmatmul.mubr.bf16.gmra.mrb[0].mxu0 %v991
        %v1030 = vpop.f32.mrb[0].mxu0
        %v1031 = vadd.f32 0.0, %v1030
        %v1032 = vpop.f32.mrb[0].mxu0
        %v1033 = vpop.f32.mrb[0].mxu0
        %v1034 = vpop.f32.mrb[0].mxu0
        %1035 = vdwg.mxu0
        %v1036 = vadd.f32 %v987, %v1031
        %v1037 = vadd.f32 %v248, %v1036
        %v1038 = vsel %vm255, %v1037, 0.0
        %1039 = vadd.xlane.f32.xlu0 %v1038
        %v1040 = vpop.xlane.xlu0 %1039
        %v1041 = vmul.f32 %v1040, %v259
        %v1042 = vsub.f32 %v1037, %v1041
        %v1043 = vmul.f32 %v1042, %v1042
        %v1044 = vsel %vm255, %v1043, 0.0
        %1045 = vadd.xlane.f32.xlu0 %v1044
        %v1046 = vpop.xlane.xlu0 %1045
        %v1047 = vmul.f32 %v1046, %v259
        %v1048 = vadd.f32 %v1047, 1e-05
        %v1049 = vrsqrt.pop %v1048
        %v1050 = vmul.f32 %v1042, %v1049
        %v1051 = vlaneseq
        %v1052 = vshrl.u32 %v1051, 7
        %v1053 = vsub.s32 0, %v1052
        %v1054 = vrot.slane %v251, %v1053
        %v1055 = vmul.f32 %v1050, %v1054
        %v1056 = vlaneseq
        %v1057 = vshrl.u32 %v1056, 7
        %v1058 = vsub.s32 0, %v1057
        %v1059 = vrot.slane %v252, %v1058
        %v1060 = vadd.f32 %v1055, %v1059
        %v1061 = vpack.c.bf16 %v1060, %v1060
        %v1062 = vld [vmem:[%s3] sm:$0xf]
        %v1063 = vld [vmem:[%s3 + $0x4] sm:$0xf]
        %v1064 = vld [vmem:[%s3 + $0x8] sm:$0xf]
        %v1065 = vld [vmem:[%s3 + $0xc] sm:$0xf]
        %v1066 = vlaneseq
        %v1067 = vshrl.u32 %v1066, 7
        %v1068 = vsub.s32 0, %v1067
        %v1069 = vrot.slane %v254, %v1068
        %v1074 = vunpack.c.l.b16 %v1062
        %v1075 = vunpack.c.l.b16 %v1063
        %v1076 = vunpack.c.l.b16 %v1064
        %v1077 = vunpack.c.l.b16 %v1065
        %v1078 = vpack.c.b16 %v1075, %v1074
        %v1079 = vpack.c.b16 %v1077, %v1076
        %v1083 = vsel %vm255, %v1061, 0
        %1085 = vmatprep.subr.bf16.mxu0 0
        %1086 = vmatpush1.bf16.msra.mxu0 %v1078
        %1087 = vmatprep.subr.bf16.mxu0 0
        %1088 = vmatpush1.bf16.msra.mxu0 %v1079
        %1089 = vmatprep.subr.bf16.mxu0 0
        %1090 = vmatpush1.bf16.msra.mxu0 0
        %1091 = vmatprep.subr.bf16.mxu0 0
        %1092 = vmatpush1.bf16.msra.mxu0 0
        %1093 = vmatprep.subr.bf16.mxu0 0
        %1094 = vmatpush1.bf16.msra.mxu0 0
        %1095 = vmatprep.subr.bf16.mxu0 0
        %1096 = vmatpush1.bf16.msra.mxu0 0
        %1097 = vmatprep.subr.bf16.mxu0 0
        %1098 = vmatpush1.bf16.msra.mxu0 0
        %1099 = vmatprep.subr.bf16.mxu0 0
        %1100 = vmatpush1.bf16.msra.mxu0 0
        %1101 = vmatprep.subr.bf16.mxu0 0
        %1102 = vmatpush1.bf16.msra.mxu0 0
        %1103 = vmatprep.subr.bf16.mxu0 0
        %1104 = vmatpush1.bf16.msra.mxu0 0
        %1105 = vmatprep.subr.bf16.mxu0 0
        %1106 = vmatpush1.bf16.msra.mxu0 0
        %1107 = vmatprep.subr.bf16.mxu0 0
        %1108 = vmatpush1.bf16.msra.mxu0 0
        %1109 = vmatprep.subr.bf16.mxu0 0
        %1110 = vmatpush1.bf16.msra.mxu0 0
        %1111 = vmatprep.subr.bf16.mxu0 0
        %1112 = vmatpush1.bf16.msra.mxu0 0
        %1113 = vmatprep.subr.bf16.mxu0 0
        %1114 = vmatpush1.bf16.msra.mxu0 0
        %1115 = vmatprep.subr.bf16.mxu0 0
        %1116 = vmatpush1.bf16.msra.mxu0 0
        %1117 = vmatprep.mubr.bf16.mxu0 0
        %1118 = vmatmul.mubr.bf16.gmra.mrb[0].mxu0 %v1083
        %v1119 = vpop.f32.mrb[0].mxu0
        %v1120 = vadd.f32 %v1069, %v1119
        %v1121 = vpop.f32.mrb[0].mxu0
        %v1122 = vpop.f32.mrb[0].mxu0
        %v1123 = vpop.f32.mrb[0].mxu0
        %1124 = vdwg.mxu0
        %v1125 = vmul.f32 %v1120, 0.5
        %v1126 = vmul.f32 %v1120, %v1120
        %v1127 = vmul.f32 %v1120, %v1126
        %v1128 = vmul.f32 %v1127, 0.044715
        %v1129 = vadd.f32 %v1120, %v1128
        %v1130 = vmul.f32 %v1129, 0.7978846
        %v1131 = vtanh.pop %v1130
        %v1132 = vadd.f32 %v1131, 1.0
        %v1133 = vmul.f32 %v1125, %v1132
        %v1134 = vpack.c.bf16 %v1133, %v1133
        %v1135 = vld [vmem:[%s4] sm:$0xf]
        %v1136 = vld [vmem:[%s4 + $0x4] sm:$0xf]
        %v1137 = vld [vmem:[%s4 + $0x8] sm:$0xf]
        %v1138 = vld [vmem:[%s4 + $0xc] sm:$0xf]
        %v1139 = vld [vmem:[%s4 + $0x10] sm:$0xf]
        %v1140 = vld [vmem:[%s4 + $0x14] sm:$0xf]
        %v1141 = vld [vmem:[%s4 + $0x18] sm:$0xf]
        %v1142 = vld [vmem:[%s4 + $0x1c] sm:$0xf]
        %v1143 = vld [vmem:[%s4 + $0x20] sm:$0xf]
        %v1144 = vld [vmem:[%s4 + $0x24] sm:$0xf]
        %v1145 = vld [vmem:[%s4 + $0x28] sm:$0xf]
        %v1146 = vld [vmem:[%s4 + $0x2c] sm:$0xf]
        %v1147 = vld [vmem:[%s4 + $0x30] sm:$0xf]
        %v1148 = vld [vmem:[%s4 + $0x34] sm:$0xf]
        %v1149 = vld [vmem:[%s4 + $0x38] sm:$0xf]
        %v1150 = vld [vmem:[%s4 + $0x3c] sm:$0xf]
        %v1151 = vlaneseq
        %v1152 = vshrl.u32 %v1151, 7
        %v1153 = vsub.s32 0, %v1152
        %v1154 = vrot.slane %v253, %v1153
        %v1171 = vunpack.c.l.b16 %v1135
        %v1172 = vunpack.c.l.b16 %v1136
        %v1173 = vunpack.c.l.b16 %v1137
        %v1174 = vunpack.c.l.b16 %v1138
        %v1175 = vunpack.c.l.b16 %v1139
        %v1176 = vunpack.c.l.b16 %v1140
        %v1177 = vunpack.c.l.b16 %v1141
        %v1178 = vunpack.c.l.b16 %v1142
        %v1179 = vunpack.c.l.b16 %v1143
        %v1180 = vunpack.c.l.b16 %v1144
        %v1181 = vunpack.c.l.b16 %v1145
        %v1182 = vunpack.c.l.b16 %v1146
        %v1183 = vunpack.c.l.b16 %v1147
        %v1184 = vunpack.c.l.b16 %v1148
        %v1185 = vunpack.c.l.b16 %v1149
        %v1186 = vunpack.c.l.b16 %v1150
        %v1187 = vpack.c.b16 %v1172, %v1171
        %v1188 = vpack.c.b16 %v1174, %v1173
        %v1189 = vpack.c.b16 %v1176, %v1175
        %v1190 = vpack.c.b16 %v1178, %v1177
        %v1191 = vpack.c.b16 %v1180, %v1179
        %v1192 = vpack.c.b16 %v1182, %v1181
        %v1193 = vpack.c.b16 %v1184, %v1183
        %v1194 = vpack.c.b16 %v1186, %v1185
        %1203 = vmatprep.subr.bf16.mxu0 0
        %1204 = vmatpush1.bf16.msra.mxu0 %v1187
        %1205 = vmatprep.subr.bf16.mxu0 0
        %1206 = vmatpush1.bf16.msra.mxu0 %v1188
        %1207 = vmatprep.subr.bf16.mxu0 0
        %1208 = vmatpush1.bf16.msra.mxu0 %v1189
        %1209 = vmatprep.subr.bf16.mxu0 0
        %1210 = vmatpush1.bf16.msra.mxu0 %v1190
        %1211 = vmatprep.subr.bf16.mxu0 0
        %1212 = vmatpush1.bf16.msra.mxu0 %v1191
        %1213 = vmatprep.subr.bf16.mxu0 0
        %1214 = vmatpush1.bf16.msra.mxu0 %v1192
        %1215 = vmatprep.subr.bf16.mxu0 0
        %1216 = vmatpush1.bf16.msra.mxu0 %v1193
        %1217 = vmatprep.subr.bf16.mxu0 0
        %1218 = vmatpush1.bf16.msra.mxu0 %v1194
        %1219 = vmatprep.subr.bf16.mxu0 0
        %1220 = vmatpush1.bf16.msra.mxu0 0
        %1221 = vmatprep.subr.bf16.mxu0 0
        %1222 = vmatpush1.bf16.msra.mxu0 0
        %1223 = vmatprep.subr.bf16.mxu0 0
        %1224 = vmatpush1.bf16.msra.mxu0 0
        %1225 = vmatprep.subr.bf16.mxu0 0
        %1226 = vmatpush1.bf16.msra.mxu0 0
        %1227 = vmatprep.subr.bf16.mxu0 0
        %1228 = vmatpush1.bf16.msra.mxu0 0
        %1229 = vmatprep.subr.bf16.mxu0 0
        %1230 = vmatpush1.bf16.msra.mxu0 0
        %1231 = vmatprep.subr.bf16.mxu0 0
        %1232 = vmatpush1.bf16.msra.mxu0 0
        %1233 = vmatprep.subr.bf16.mxu0 0
        %1234 = vmatpush1.bf16.msra.mxu0 0
        %1235 = vmatprep.mubr.bf16.mxu0 0
        %1236 = vmatmul.mubr.bf16.gmra.mrb[0].mxu0 %v1134
        %v1237 = vpop.f32.mrb[0].mxu0
        %v1238 = vadd.f32 %v1154, %v1237
        %v1239 = vpop.f32.mrb[0].mxu0
        %v1240 = vpop.f32.mrb[0].mxu0
        %v1241 = vpop.f32.mrb[0].mxu0
        %1242 = vdwg.mxu0
        %v1243 = vadd.f32 %v1037, %v1238
        %1244 = vst.msk [vmem:[%s242] sm:$0xff] %vm255, %v1243
        %s1245 = sand.u32 %s159, 1
        %s1246 = scalar_lea.sflag [#allocation6], %s1245
        %s1247 = sand.u32 %s159, 1
        %s1248 = smul.addr %s1247, 8
        %s1249 = scalar_lea.vmem [#allocation5], %s1248
        // Predicated region
        $region45: #{tpu_custom_call.1} parent=43 // pred_check
          %p1250 = pneg %p169
        $region46: #{tpu_custom_call.1} parent=43 // pred_check_branch
          %1252 = sbr.rel (%p1250) target = $region48
        $region47: #{tpu_custom_call.1} parent=43 // pred_region
          %s1254 = ssub.s32 128, 128
          %1255 = vsyncadd %s1246, %s1254
          %s1256 = smul.addr %s20, 128
          %s1257 = scalar_lea.hbm %s6, %s1256
          %s1259 = sshll.u32 %s1249, 4
          %s1260 = int_to_ptr.vmem [resolvable:$true] %s1259
          %1262 = dma.vmem_to_hbm [thread:$0]  %s1260, 128, %s1257, %s1246
        $region48: #{tpu_custom_call.1} parent=43 // pred_fallthru
          _
      $region44: #{tpu_custom_call.1} parent=5 // pred_fallthru
        _
      %p1263 = scmp.le.s32.totalorder 2, %s15
      // Predicated region
      $region49: #{tpu_custom_call.1} parent=5 // pred_check
        %p1264 = pneg %p1263
      $region50: #{tpu_custom_call.1} parent=5 // pred_check_branch
        %1266 = sbr.rel (%p1264) target = $region52
      $region51: #{tpu_custom_call.1} parent=5 // pred_region
        %s1267 = ssub.s32 %s15, 2
        // Predicated region
        $region53: #{tpu_custom_call.1} parent=51 // pred_check
          %p1268 = pneg %p175
        $region54: #{tpu_custom_call.1} parent=51 // pred_check_branch
          %1270 = sbr.rel (%p1268) target = $region56
        $region55: #{tpu_custom_call.1} parent=51 // pred_region
          %s1271 = sand.u32 %s160, 1
          %s1272 = scalar_lea.sflag [#allocation6], %s1271
          %s1273 = sand.u32 %s160, 1
          %s1274 = smul.addr %s1273, 8
          %s1275 = scalar_lea.vmem [#allocation5], %s1274
          %1276 = dma.done %s1272, 128
        $region56: #{tpu_custom_call.1} parent=51 // pred_fallthru
          _
      $region52: #{tpu_custom_call.1} parent=5 // pred_fallthru
        _
    $region6: #{tpu_custom_call.1} parent=1 // loop_footer
      %s19 = sadd.s32 1, %s15
    $region7: #{tpu_custom_call.1} parent=1 // loop_footer_branch
      %14 = sbr.rel target = $region3
    $region8: #{tpu_custom_call.1} parent=1 // loop_exit
      _
    %1277 = vsyncpa [#allocation6], 1
    %s1278 = scalar_lea.sflag [#allocation6], 1
    %1279 = vsyncpa %s1278, 1

</llo_original>
